<compile_context>
chip_gen: v7x
topology: tpu7x:2x2x1
jax: 0.10.0
libtpu: 0.0.40
codegen_flags: <defaults>
</compile_context>

<pallas_src>
import functools

import jax
import jax.numpy as jnp
from jax.experimental import pallas as pl
from jax.experimental.pallas import tpu as pltpu

NORM_EPS = 1e-5


def _mhca_kernel(x_ref, mask_ref, wcol_ref, shift_ref, wp_ref, out_ref,
                 xpad_ref, col_ref, *, H, W, C, BBLK):
    # x_ref    : (BBLK, H, W, C)        un-padded input block (f32)
    # mask_ref : (BBLK, H, W, 1)        mask (f32)
    # wcol_ref : (9*C, C)               im2col grouped-conv weights * BN scale (bf16)
    # shift_ref: (1, C)                 folded BN shift (f32)
    # wp_ref   : (C, C)                 1x1 projection weights (in, out) (bf16)
    # out_ref  : (BBLK, H, W, C)
    # xpad_ref : (BBLK, H+2, W+2, C)    VMEM scratch, zero halo built in-kernel
    # col_ref  : (BBLK*H*W, 9*C)        VMEM im2col scratch (bf16)
    M = H * W

    # In-kernel zero padding: zero the scratch, then copy the interior.
    # (Re-zeroed every step so the grid axis is safe under megacore
    #  "parallel" sharding; the halo bytes are tiny.)
    xpad_ref[...] = jnp.zeros_like(xpad_ref)
    xpad_ref[:, 1:H + 1, 1:W + 1, :] = x_ref[...]

    # Build im2col: 9 shifted views -> one (BBLK*M, 9*C) bf16 slab.
    for b in range(BBLK):
        for tap in range(9):
            ky, kx = tap // 3, tap % 3
            xs = xpad_ref[b, ky:ky + H, kx:kx + W, :].reshape(M, C)
            col_ref[b * M:(b + 1) * M, tap * C:(tap + 1) * C] = (
                xs.astype(col_ref.dtype))

    # Grouped 3x3 conv (+ folded BN scale) as ONE MXU matmul, f32 accumulation.
    acc = jnp.dot(col_ref[...], wcol_ref[...],
                  preferred_element_type=jnp.float32)

    # BN shift + ReLU + mask (f32 elementwise math).
    y = jnp.maximum(acc + shift_ref[...], 0.0)
    y = y * mask_ref[...].reshape(BBLK * M, 1)

    # 1x1 projection (bf16 MXU inputs, f32 accumulation).
    o = jnp.dot(y.astype(wp_ref.dtype), wp_ref[...],
                preferred_element_type=jnp.float32)
    out_ref[...] = o.reshape(BBLK, H, W, C).astype(out_ref.dtype)


def masked_mhca_pallas(x_nhwc, mask_nhwc, w_col, bn_shift, w_proj, *,
                       batch_block=None):
    B, H, W, C = x_nhwc.shape
    if batch_block is None:
        # Aggregate batch into the matmul M dim, but keep >= 2 grid steps so a
        # dual-TensorCore chip (v7x) can shard the "parallel" axis.
        batch_block = next(bb for bb in range(max(1, B // 2), 0, -1)
                           if B % bb == 0)
    assert B % batch_block == 0
    nsteps = B // batch_block

    kernel = functools.partial(_mhca_kernel, H=H, W=W, C=C, BBLK=batch_block)
    return pl.pallas_call(
        kernel,
        out_shape=jax.ShapeDtypeStruct((B, H, W, C), x_nhwc.dtype),
        grid_spec=pltpu.PrefetchScalarGridSpec(
            num_scalar_prefetch=0,
            grid=(nsteps,),
            in_specs=[
                pl.BlockSpec((batch_block, H, W, C), lambda b: (b, 0, 0, 0)),
                pl.BlockSpec((batch_block, H, W, 1), lambda b: (b, 0, 0, 0)),
                pl.BlockSpec((9 * C, C), lambda b: (0, 0)),
                pl.BlockSpec((1, C), lambda b: (0, 0)),
                pl.BlockSpec((C, C), lambda b: (0, 0)),
            ],
            out_specs=pl.BlockSpec((batch_block, H, W, C),
                                   lambda b: (b, 0, 0, 0)),
            scratch_shapes=[
                pltpu.VMEM((batch_block, H + 2, W + 2, C), jnp.float32),
                pltpu.VMEM((batch_block * H * W, 9 * C), jnp.bfloat16),
            ]),
        compiler_params=pltpu.CompilerParams(
            dimension_semantics=("parallel",)),
    )(x_nhwc, mask_nhwc, w_col, bn_shift, w_proj)


def build_params(key, out_channels, head_dim):
    """Deterministic parameter init matching MaskedMHCA.__init__ shapes."""
    num_heads = out_channels // head_dim
    C, hd = out_channels, head_dim
    k1, k2, k3, k4, k5, k6 = jax.random.split(key, 6)

    # group_conv3x3 weight, PyTorch layout: (C_out, C_in/groups, 3, 3)
    w3_torch = jax.random.normal(k1, (C, hd, 3, 3), jnp.float32) * 0.1
    # projection 1x1 weight, PyTorch layout: (C_out, C_in, 1, 1)
    wp_torch = jax.random.normal(k2, (C, C, 1, 1), jnp.float32) * 0.1
    # BatchNorm2d params (eval-mode semantics)
    gamma = 1.0 + 0.05 * jax.random.normal(k3, (C,), jnp.float32)
    beta = 0.05 * jax.random.normal(k4, (C,), jnp.float32)
    running_mean = 0.1 * jax.random.normal(k5, (C,), jnp.float32)
    running_var = 1.0 + 0.1 * jax.random.uniform(k6, (C,), jnp.float32)

    # ---- convert to kernel-friendly layouts ----
    # Block-diagonal per-tap matrices: w3_full[tap, c_in, c_out]
    # PyTorch grouped conv: out[g*hd+o] += w3_torch[g*hd+o, i, ky, kx] *
    #                                      x[g*hd+i, y+ky-1, x+kx-1]
    w3_full = jnp.zeros((9, C, C), jnp.float32)
    for g in range(num_heads):
        # (hd_out, hd_in, 3, 3) -> (3, 3, hd_in, hd_out) -> (9, hd_in, hd_out)
        blk = jnp.transpose(w3_torch[g * hd:(g + 1) * hd], (2, 3, 1, 0))
        blk = blk.reshape(9, hd, hd)
        w3_full = w3_full.at[:, g * hd:(g + 1) * hd,
                             g * hd:(g + 1) * hd].set(blk)

    # Fold BatchNorm (eval mode) into the conv weights (scale) + a shift.
    # TODO(synk): PyTorch BatchNorm2d in train mode would use batch statistics;
    # eval-mode (running stats) semantics are implemented here.
    bn_scale = gamma / jnp.sqrt(running_var + NORM_EPS)
    bn_shift = (beta - running_mean * bn_scale).reshape(1, C)

    # im2col weight: rows ordered (tap, c_in), BN scale folded, bf16 for MXU.
    w_col = (w3_full * bn_scale[None, None, :]).reshape(9 * C, C)
    w_col = w_col.astype(jnp.bfloat16)

    # 1x1 projection: out[o] = sum_i wp_torch[o, i] * x[i]  ->  (in, out) matrix
    w_proj = jnp.transpose(wp_torch[:, :, 0, 0], (1, 0)).astype(jnp.bfloat16)

    return w_col, bn_shift, w_proj, (w3_torch, wp_torch, gamma, beta,
                                     running_mean, running_var)


def reference_jax(x_nchw, mask_nchw, torch_params, num_heads):
    """Pure-JAX NCHW reference reproducing the PyTorch forward (eval BN)."""
    w3_torch, wp_torch, gamma, beta, rmean, rvar = torch_params
    out = jax.lax.conv_general_dilated(
        x_nchw, w3_torch, window_strides=(1, 1), padding=((1, 1), (1, 1)),
        dimension_numbers=("NCHW", "OIHW", "NCHW"),
        feature_group_count=num_heads)
    out = (out - rmean[None, :, None, None]) / jnp.sqrt(
        rvar[None, :, None, None] + NORM_EPS)
    out = out * gamma[None, :, None, None] + beta[None, :, None, None]
    out = jnp.maximum(out, 0.0)
    out = out * mask_nchw
    out = jax.lax.conv_general_dilated(
        out, wp_torch, window_strides=(1, 1), padding=((0, 0), (0, 0)),
        dimension_numbers=("NCHW", "OIHW", "NCHW"))
    return out


if __name__ == "__main__":
    B, C, H, W = 2, 32, 16, 16
    head_dim = 8
    num_heads = C // head_dim

    key = jax.random.PRNGKey(0)
    kx, km, kp = jax.random.split(key, 3)

    # PyTorch-convention NCHW inputs
    x_nchw = jax.random.normal(kx, (B, C, H, W), jnp.float32)
    mask_nchw = (jax.random.uniform(km, (B, 1, H, W)) > 0.3).astype(jnp.float32)

    w_col, bn_shift, w_proj, torch_params = build_params(kp, C, head_dim)

    # convert to NHWC for the kernel (layout glue only)
    x_nhwc = jnp.transpose(x_nchw, (0, 2, 3, 1))
    mask_nhwc = jnp.transpose(mask_nchw, (0, 2, 3, 1))

    out_nhwc = masked_mhca_pallas(x_nhwc, mask_nhwc, w_col, bn_shift, w_proj)
    out_nhwc = jax.block_until_ready(out_nhwc)
    out_nchw = jnp.transpose(out_nhwc, (0, 3, 1, 2))

    # correctness check vs pure-JAX NCHW reference (tolerance relaxed for the
    # bf16 MXU inputs; accumulation stays f32)
    ref = reference_jax(x_nchw, mask_nchw, torch_params, num_heads)
    assert jnp.allclose(out_nchw, ref, atol=5e-2, rtol=5e-2), (
        float(jnp.max(jnp.abs(out_nchw - ref))))

    print("KERNEL_OK")
</pallas_src>

<mosaic_0001>
module attributes {stable_mosaic.version = 11 : i64} {
  func.func @_mhca_kernel(%arg0: i32, %arg1: memref<1x16x16x32xf32, #tpu.memory_space<vmem>>, %arg2: memref<1x16x16x1xf32, #tpu.memory_space<vmem>>, %arg3: memref<288x32xbf16, #tpu.memory_space<vmem>>, %arg4: memref<1x32xf32, #tpu.memory_space<vmem>>, %arg5: memref<32x32xbf16, #tpu.memory_space<vmem>>, %arg6: memref<1x16x16x32xf32, #tpu.memory_space<vmem>>, %arg7: memref<1x18x18x32xf32, #tpu.memory_space<vmem>>, %arg8: memref<256x288xbf16, #tpu.memory_space<vmem>>) attributes {dimension_semantics = [#tpu.dimension_semantics<parallel>], iteration_bounds = array<i64: 2>, scalar_prefetch = 0 : i64, scratch_operands = 2 : i64, tpu.core_type = #tpu.core_type<tc>, window_params = [{transform_indices = @transform_0, window_bounds = array<i64: 1, 16, 16, 32>}, {transform_indices = @transform_1, window_bounds = array<i64: 1, 16, 16, 1>}, {pipeline_mode = #tpu.pipeline_mode<synchronous>, transform_indices = @transform_2, window_bounds = array<i64: 288, 32>}, {pipeline_mode = #tpu.pipeline_mode<synchronous>, transform_indices = @transform_3, window_bounds = array<i64: 1, 32>}, {pipeline_mode = #tpu.pipeline_mode<synchronous>, transform_indices = @transform_4, window_bounds = array<i64: 32, 32>}, {transform_indices = @transform_5, window_bounds = array<i64: 1, 16, 16, 32>}]} {
    %cst = arith.constant 0.000000e+00 : f32
    %0 = vector.broadcast %cst : f32 to vector<1x18x18x32xf32>
    %c0 = arith.constant 0 : index
    %c0_0 = arith.constant 0 : index
    %c0_1 = arith.constant 0 : index
    %c0_2 = arith.constant 0 : index
    %1 = vector.load %arg7[%c0, %c0_0, %c0_1, %c0_2] : memref<1x18x18x32xf32, #tpu.memory_space<vmem>>, vector<1x18x18x32xf32>
    tpu.vector_store %arg7[%c0, %c0_0, %c0_1, %c0_2], %0 {strides = array<i32>} : memref<1x18x18x32xf32, #tpu.memory_space<vmem>>, vector<1x18x18x32xf32>,
    %c0_3 = arith.constant 0 : index
    %c0_4 = arith.constant 0 : index
    %c0_5 = arith.constant 0 : index
    %c0_6 = arith.constant 0 : index
    %2 = vector.load %arg1[%c0_3, %c0_4, %c0_5, %c0_6] : memref<1x16x16x32xf32, #tpu.memory_space<vmem>>, vector<1x16x16x32xf32>
    %c0_7 = arith.constant 0 : index
    %c1 = arith.constant 1 : index
    %c1_8 = arith.constant 1 : index
    %c0_9 = arith.constant 0 : index
    %3 = vector.load %arg7[%c0_7, %c1, %c1_8, %c0_9] : memref<1x18x18x32xf32, #tpu.memory_space<vmem>>, vector<1x16x16x32xf32>
    tpu.vector_store %arg7[%c0_7, %c1, %c1_8, %c0_9], %2 {strides = array<i32>} : memref<1x18x18x32xf32, #tpu.memory_space<vmem>>, vector<1x16x16x32xf32>,
    %c0_10 = arith.constant 0 : index
    %c0_11 = arith.constant 0 : index
    %c0_12 = arith.constant 0 : index
    %c0_13 = arith.constant 0 : index
    %4 = vector.load %arg7[%c0_10, %c0_11, %c0_12, %c0_13] : memref<1x18x18x32xf32, #tpu.memory_space<vmem>>, vector<1x16x16x32xf32>
    %5 = vector.shape_cast %4 : vector<1x16x16x32xf32> to vector<16x16x32xf32>
    %6 = vector.shape_cast %5 : vector<16x16x32xf32> to vector<256x32xf32>
    %7 = arith.truncf %6 : vector<256x32xf32> to vector<256x32xbf16>
    %c0_14 = arith.constant 0 : index
    %c0_15 = arith.constant 0 : index
    %8 = vector.load %arg8[%c0_14, %c0_15] : memref<256x288xbf16, #tpu.memory_space<vmem>>, vector<256x32xbf16>
    tpu.vector_store %arg8[%c0_14, %c0_15], %7 {strides = array<i32>} : memref<256x288xbf16, #tpu.memory_space<vmem>>, vector<256x32xbf16>,
    %c0_16 = arith.constant 0 : index
    %c0_17 = arith.constant 0 : index
    %c1_18 = arith.constant 1 : index
    %c0_19 = arith.constant 0 : index
    %9 = vector.load %arg7[%c0_16, %c0_17, %c1_18, %c0_19] : memref<1x18x18x32xf32, #tpu.memory_space<vmem>>, vector<1x16x16x32xf32>
    %10 = vector.shape_cast %9 : vector<1x16x16x32xf32> to vector<16x16x32xf32>
    %11 = vector.shape_cast %10 : vector<16x16x32xf32> to vector<256x32xf32>
    %12 = arith.truncf %11 : vector<256x32xf32> to vector<256x32xbf16>
    %c0_20 = arith.constant 0 : index
    %c32 = arith.constant 32 : index
    %13 = vector.load %arg8[%c0_20, %c32] : memref<256x288xbf16, #tpu.memory_space<vmem>>, vector<256x32xbf16>
    tpu.vector_store %arg8[%c0_20, %c32], %12 {strides = array<i32>} : memref<256x288xbf16, #tpu.memory_space<vmem>>, vector<256x32xbf16>,
    %c0_21 = arith.constant 0 : index
    %c0_22 = arith.constant 0 : index
    %c2 = arith.constant 2 : index
    %c0_23 = arith.constant 0 : index
    %14 = vector.load %arg7[%c0_21, %c0_22, %c2, %c0_23] : memref<1x18x18x32xf32, #tpu.memory_space<vmem>>, vector<1x16x16x32xf32>
    %15 = vector.shape_cast %14 : vector<1x16x16x32xf32> to vector<16x16x32xf32>
    %16 = vector.shape_cast %15 : vector<16x16x32xf32> to vector<256x32xf32>
    %17 = arith.truncf %16 : vector<256x32xf32> to vector<256x32xbf16>
    %c0_24 = arith.constant 0 : index
    %c64 = arith.constant 64 : index
    %18 = vector.load %arg8[%c0_24, %c64] : memref<256x288xbf16, #tpu.memory_space<vmem>>, vector<256x32xbf16>
    tpu.vector_store %arg8[%c0_24, %c64], %17 {strides = array<i32>} : memref<256x288xbf16, #tpu.memory_space<vmem>>, vector<256x32xbf16>,
    %c0_25 = arith.constant 0 : index
    %c1_26 = arith.constant 1 : index
    %c0_27 = arith.constant 0 : index
    %c0_28 = arith.constant 0 : index
    %19 = vector.load %arg7[%c0_25, %c1_26, %c0_27, %c0_28] : memref<1x18x18x32xf32, #tpu.memory_space<vmem>>, vector<1x16x16x32xf32>
    %20 = vector.shape_cast %19 : vector<1x16x16x32xf32> to vector<16x16x32xf32>
    %21 = vector.shape_cast %20 : vector<16x16x32xf32> to vector<256x32xf32>
    %22 = arith.truncf %21 : vector<256x32xf32> to vector<256x32xbf16>
    %c0_29 = arith.constant 0 : index
    %c96 = arith.constant 96 : index
    %23 = vector.load %arg8[%c0_29, %c96] : memref<256x288xbf16, #tpu.memory_space<vmem>>, vector<256x32xbf16>
    tpu.vector_store %arg8[%c0_29, %c96], %22 {strides = array<i32>} : memref<256x288xbf16, #tpu.memory_space<vmem>>, vector<256x32xbf16>,
    %c0_30 = arith.constant 0 : index
    %c1_31 = arith.constant 1 : index
    %c1_32 = arith.constant 1 : index
    %c0_33 = arith.constant 0 : index
    %24 = vector.load %arg7[%c0_30, %c1_31, %c1_32, %c0_33] : memref<1x18x18x32xf32, #tpu.memory_space<vmem>>, vector<1x16x16x32xf32>
    %25 = vector.shape_cast %24 : vector<1x16x16x32xf32> to vector<16x16x32xf32>
    %26 = vector.shape_cast %25 : vector<16x16x32xf32> to vector<256x32xf32>
    %27 = arith.truncf %26 : vector<256x32xf32> to vector<256x32xbf16>
    %c0_34 = arith.constant 0 : index
    %c128 = arith.constant 128 : index
    %28 = vector.load %arg8[%c0_34, %c128] : memref<256x288xbf16, #tpu.memory_space<vmem>>, vector<256x32xbf16>
    tpu.vector_store %arg8[%c0_34, %c128], %27 {strides = array<i32>} : memref<256x288xbf16, #tpu.memory_space<vmem>>, vector<256x32xbf16>,
    %c0_35 = arith.constant 0 : index
    %c1_36 = arith.constant 1 : index
    %c2_37 = arith.constant 2 : index
    %c0_38 = arith.constant 0 : index
    %29 = vector.load %arg7[%c0_35, %c1_36, %c2_37, %c0_38] : memref<1x18x18x32xf32, #tpu.memory_space<vmem>>, vector<1x16x16x32xf32>
    %30 = vector.shape_cast %29 : vector<1x16x16x32xf32> to vector<16x16x32xf32>
    %31 = vector.shape_cast %30 : vector<16x16x32xf32> to vector<256x32xf32>
    %32 = arith.truncf %31 : vector<256x32xf32> to vector<256x32xbf16>
    %c0_39 = arith.constant 0 : index
    %c160 = arith.constant 160 : index
    %33 = vector.load %arg8[%c0_39, %c160] : memref<256x288xbf16, #tpu.memory_space<vmem>>, vector<256x32xbf16>
    tpu.vector_store %arg8[%c0_39, %c160], %32 {strides = array<i32>} : memref<256x288xbf16, #tpu.memory_space<vmem>>, vector<256x32xbf16>,
    %c0_40 = arith.constant 0 : index
    %c2_41 = arith.constant 2 : index
    %c0_42 = arith.constant 0 : index
    %c0_43 = arith.constant 0 : index
    %34 = vector.load %arg7[%c0_40, %c2_41, %c0_42, %c0_43] : memref<1x18x18x32xf32, #tpu.memory_space<vmem>>, vector<1x16x16x32xf32>
    %35 = vector.shape_cast %34 : vector<1x16x16x32xf32> to vector<16x16x32xf32>
    %36 = vector.shape_cast %35 : vector<16x16x32xf32> to vector<256x32xf32>
    %37 = arith.truncf %36 : vector<256x32xf32> to vector<256x32xbf16>
    %c0_44 = arith.constant 0 : index
    %c192 = arith.constant 192 : index
    %38 = vector.load %arg8[%c0_44, %c192] : memref<256x288xbf16, #tpu.memory_space<vmem>>, vector<256x32xbf16>
    tpu.vector_store %arg8[%c0_44, %c192], %37 {strides = array<i32>} : memref<256x288xbf16, #tpu.memory_space<vmem>>, vector<256x32xbf16>,
    %c0_45 = arith.constant 0 : index
    %c2_46 = arith.constant 2 : index
    %c1_47 = arith.constant 1 : index
    %c0_48 = arith.constant 0 : index
    %39 = vector.load %arg7[%c0_45, %c2_46, %c1_47, %c0_48] : memref<1x18x18x32xf32, #tpu.memory_space<vmem>>, vector<1x16x16x32xf32>
    %40 = vector.shape_cast %39 : vector<1x16x16x32xf32> to vector<16x16x32xf32>
    %41 = vector.shape_cast %40 : vector<16x16x32xf32> to vector<256x32xf32>
    %42 = arith.truncf %41 : vector<256x32xf32> to vector<256x32xbf16>
    %c0_49 = arith.constant 0 : index
    %c224 = arith.constant 224 : index
    %43 = vector.load %arg8[%c0_49, %c224] : memref<256x288xbf16, #tpu.memory_space<vmem>>, vector<256x32xbf16>
    tpu.vector_store %arg8[%c0_49, %c224], %42 {strides = array<i32>} : memref<256x288xbf16, #tpu.memory_space<vmem>>, vector<256x32xbf16>,
    %c0_50 = arith.constant 0 : index
    %c2_51 = arith.constant 2 : index
    %c2_52 = arith.constant 2 : index
    %c0_53 = arith.constant 0 : index
    %44 = vector.load %arg7[%c0_50, %c2_51, %c2_52, %c0_53] : memref<1x18x18x32xf32, #tpu.memory_space<vmem>>, vector<1x16x16x32xf32>
    %45 = vector.shape_cast %44 : vector<1x16x16x32xf32> to vector<16x16x32xf32>
    %46 = vector.shape_cast %45 : vector<16x16x32xf32> to vector<256x32xf32>
    %47 = arith.truncf %46 : vector<256x32xf32> to vector<256x32xbf16>
    %c0_54 = arith.constant 0 : index
    %c256 = arith.constant 256 : index
    %48 = vector.load %arg8[%c0_54, %c256] : memref<256x288xbf16, #tpu.memory_space<vmem>>, vector<256x32xbf16>
    tpu.vector_store %arg8[%c0_54, %c256], %47 {strides = array<i32>} : memref<256x288xbf16, #tpu.memory_space<vmem>>, vector<256x32xbf16>,
    %c0_55 = arith.constant 0 : index
    %c0_56 = arith.constant 0 : index
    %49 = vector.load %arg8[%c0_55, %c0_56] : memref<256x288xbf16, #tpu.memory_space<vmem>>, vector<256x288xbf16>
    %c0_57 = arith.constant 0 : index
    %c0_58 = arith.constant 0 : index
    %50 = vector.load %arg3[%c0_57, %c0_58] : memref<288x32xbf16, #tpu.memory_space<vmem>>, vector<288x32xbf16>
    %cst_59 = arith.constant dense<0.000000e+00> : vector<256x32xf32>
    %51 = tpu.matmul %49, %50, %cst_59 {dimension_numbers = #tpu.dot_dimension_numbers<[1], [0], [0], [1], [0, 0, 1, 1], [], []>} : vector<256x288xbf16>, vector<288x32xbf16>, vector<256x32xf32> -> vector<256x32xf32>
    %c0_60 = arith.constant 0 : index
    %c0_61 = arith.constant 0 : index
    %52 = vector.load %arg4[%c0_60, %c0_61] : memref<1x32xf32, #tpu.memory_space<vmem>>, vector<1x32xf32>
    %53 = vector.broadcast %52 : vector<1x32xf32> to vector<256x32xf32>
    %54 = arith.addf %51, %53 : vector<256x32xf32>
    %cst_62 = arith.constant 0.000000e+00 : f32
    %55 = vector.broadcast %cst_62 : f32 to vector<256x32xf32>
    %56 = arith.maximumf %54, %55 : vector<256x32xf32>
    %c0_63 = arith.constant 0 : index
    %c0_64 = arith.constant 0 : index
    %c0_65 = arith.constant 0 : index
    %c0_66 = arith.constant 0 : index
    %57 = vector.load %arg2[%c0_63, %c0_64, %c0_65, %c0_66] : memref<1x16x16x1xf32, #tpu.memory_space<vmem>>, vector<1x16x16x1xf32>
    %58 = vector.shape_cast %57 : vector<1x16x16x1xf32> to vector<256x1xf32>
    %59 = vector.broadcast %58 : vector<256x1xf32> to vector<256x32xf32>
    %60 = arith.mulf %56, %59 : vector<256x32xf32>
    %61 = arith.truncf %60 : vector<256x32xf32> to vector<256x32xbf16>
    %c0_67 = arith.constant 0 : index
    %c0_68 = arith.constant 0 : index
    %62 = vector.load %arg5[%c0_67, %c0_68] : memref<32x32xbf16, #tpu.memory_space<vmem>>, vector<32x32xbf16>
    %cst_69 = arith.constant dense<0.000000e+00> : vector<256x32xf32>
    %63 = tpu.matmul %61, %62, %cst_69 {dimension_numbers = #tpu.dot_dimension_numbers<[1], [0], [0], [1], [0, 0, 1, 1], [], []>} : vector<256x32xbf16>, vector<32x32xbf16>, vector<256x32xf32> -> vector<256x32xf32>
    %64 = vector.shape_cast %63 : vector<256x32xf32> to vector<1x16x16x32xf32>
    %c0_70 = arith.constant 0 : index
    %c0_71 = arith.constant 0 : index
    %c0_72 = arith.constant 0 : index
    %c0_73 = arith.constant 0 : index
    %65 = vector.load %arg6[%c0_70, %c0_71, %c0_72, %c0_73] : memref<1x16x16x32xf32, #tpu.memory_space<vmem>>, vector<1x16x16x32xf32>
    tpu.vector_store %arg6[%c0_70, %c0_71, %c0_72, %c0_73], %64 {strides = array<i32>} : memref<1x16x16x32xf32, #tpu.memory_space<vmem>>, vector<1x16x16x32xf32>,
    return
  }
  func.func @transform_0(%arg0: i32) -> (i32, i32, i32, i32) {
    %c0_i32 = arith.constant 0 : i32
    %c0_i32_0 = arith.constant 0 : i32
    %c0_i32_1 = arith.constant 0 : i32
    %c0_i32_2 = arith.constant 0 : i32
    return %arg0, %c0_i32, %c0_i32_0, %c0_i32_1 : i32, i32, i32, i32
  }
  func.func @transform_1(%arg0: i32) -> (i32, i32, i32, i32) {
    %c0_i32 = arith.constant 0 : i32
    %c0_i32_0 = arith.constant 0 : i32
    %c0_i32_1 = arith.constant 0 : i32
    %c0_i32_2 = arith.constant 0 : i32
    return %arg0, %c0_i32, %c0_i32_0, %c0_i32_1 : i32, i32, i32, i32
  }
  func.func @transform_2(%arg0: i32) -> (i32, i32) {
    %c0_i32 = arith.constant 0 : i32
    %c0_i32_0 = arith.constant 0 : i32
    %c0_i32_1 = arith.constant 0 : i32
    return %c0_i32, %c0_i32_0 : i32, i32
  }
  func.func @transform_3(%arg0: i32) -> (i32, i32) {
    %c0_i32 = arith.constant 0 : i32
    %c0_i32_0 = arith.constant 0 : i32
    %c0_i32_1 = arith.constant 0 : i32
    return %c0_i32, %c0_i32_0 : i32, i32
  }
  func.func @transform_4(%arg0: i32) -> (i32, i32) {
    %c0_i32 = arith.constant 0 : i32
    %c0_i32_0 = arith.constant 0 : i32
    %c0_i32_1 = arith.constant 0 : i32
    return %c0_i32, %c0_i32_0 : i32, i32
  }
  func.func @transform_5(%arg0: i32) -> (i32, i32, i32, i32) {
    %c0_i32 = arith.constant 0 : i32
    %c0_i32_0 = arith.constant 0 : i32
    %c0_i32_1 = arith.constant 0 : i32
    %c0_i32_2 = arith.constant 0 : i32
    return %arg0, %c0_i32, %c0_i32_0, %c0_i32_1 : i32, i32, i32, i32
  }
}

</mosaic_0001>

<llo_original>
// kernel: tpu_custom_call.1
$region0: #{tpu_custom_call.1}
  #allocation0 [shape = 'u32[]', space=smem, size = 0x4, offset = 0x4, fixed_abs, tag = 'smem constant byte address 0x4 - core index']
  #allocation1 [shape = 'u32[144,128]{1,0:T(1,128)}', space=vmem, size = 0x12000, scoped, tag = 'internal scratch']
  #allocation2 [shape = 'f32[1,18,18,32]{3,2,1,0:T(8,128)}', space=vmem, size = 0x36000, scoped, tag = 'scratch operand']
  #allocation3 [shape = 'bf16[256,288]{1,0:T(16,128)(2,1)}', space=vmem, size = 0x30000, scoped, tag = 'scratch operand']
  %s0 = inlined_call_operand.vmem [shape: f32[2,16,16,32], index: 0, kind: input, shape index: {}]
  %s1 = inlined_call_operand.vmem [shape: f32[2,16,16,1], index: 1, kind: input, shape index: {}]
  %s2 = inlined_call_operand.vmem [shape: bf16[288,32], index: 2, kind: input, shape index: {}]
  %s3 = inlined_call_operand.vmem [shape: f32[1,32], index: 3, kind: input, shape index: {}]
  %s4 = inlined_call_operand.vmem [shape: bf16[32,32], index: 4, kind: input, shape index: {}]
  %s5 = inlined_call_operand.hbm [shape: f32[2,16,16,32], index: 5, kind: output, shape index: {}]
  %s6 = sld [smem:[#allocation0]]
  $region53: #{tpu_custom_call.1} parent=0
    _
  %s8 = ssub.s32 1, %s6
  %s9 = scalar_select 0, %s8, %s6
  $region1: #{tpu_custom_call.1} parent=0
    #allocation4 [shape = 'u8[262144]{0}', space=vmem, size = 0x40000, scoped, tag = 'output window, operand 0']
    #allocation5 [shape = 's32[2]{0}', space=sflag, size = 0x8, scoped, tag = 'scoped memory for tpu_custom_call.1']
    %10 = vsyncpa [#allocation5], 0
    %s11 = scalar_lea.sflag [#allocation5], 1
    %12 = vsyncpa %s11, 0
    loop: start=0, step=1, limit=4
    $region2: #{tpu_custom_call.1} parent=1 // loop_pre_header
      _
    $region3: #{tpu_custom_call.1} parent=1 // loop_header
      %s14 = sphi 0, %s18
      %p15 = scmp.ge.s32.totalorder %s14, 4
      %s24 = sphi 0, %s26
      %s27 = sphi 0, %s24
      %s28 = sphi 0, %s27
      %s44 = sphi 0, %s28
      %s50 = sphi 0, %s52
      %s53 = sphi 0, %s50
      %s54 = sphi 0, %s53
      %s70 = sphi 0, %s54
      %s74 = sphi 0, %s74
      %s76 = sphi 0, %s74
      %s77 = sphi 0, %s76
      %s91 = sphi 0, %s77
      %s95 = sphi 0, %s95
      %s97 = sphi 0, %s95
      %s98 = sphi 0, %s97
      %s112 = sphi 0, %s98
      %s116 = sphi 0, %s116
      %s118 = sphi 0, %s116
      %s119 = sphi 0, %s118
      %s133 = sphi 0, %s119
      %s139 = sphi 0, %s141
      %s142 = sphi 0, %s139
      %s143 = sphi 0, %s142
      %s159 = sphi 0, %s143
    $region4: #{tpu_custom_call.1} parent=1 // loop_header_branch
      %17 = sbr.rel (%p15) target = $region8
    $region5: #{tpu_custom_call.1} parent=1 // loop_body
      %s19 = ssub.s32 %s14, 1
      %s20 = ssub.s32 %s14, 2
      %s21 = sadd.s32 %s14, 1
      %s22 = ssub.s32 %s14, %s21
      %p23 = scmp.eq.s32.totalorder %s22, 0
      %s25 = sadd.s32 %s24, 1
      %s26 = scalar_select %p23, %s24, %s25
      %p29 = pneg %p23
      %p30 = scmp.eq.s32.totalorder %s14, 1
      %p31 = por %p29, %p30
      %p32 = scmp.ne.s32.totalorder %s24, %s27
      %p33 = scmp.eq.s32.totalorder %s14, 0
      %p34 = por %p32, %p33
      %p35 = scmp.ne.s32.totalorder %s24, %s27
      %p36 = scmp.eq.s32.totalorder %s19, 1
      %p37 = por %p35, %p36
      %p38 = scmp.ne.s32.totalorder %s27, %s28
      %p39 = scmp.eq.s32.totalorder %s19, 0
      %p40 = por %p38, %p39
      %p41 = scmp.ne.s32.totalorder %s27, %s28
      %p42 = scmp.eq.s32.totalorder %s20, 1
      %p43 = por %p41, %p42
      %p45 = scmp.ne.s32.totalorder %s28, %s44
      %p46 = scmp.eq.s32.totalorder %s20, 0
      %p47 = por %p45, %p46
      %s48 = ssub.s32 %s14, %s21
      %p49 = scmp.eq.s32.totalorder %s48, 0
      %s51 = sadd.s32 %s50, 1
      %s52 = scalar_select %p49, %s50, %s51
      %p55 = pneg %p49
      %p56 = scmp.eq.s32.totalorder %s14, 1
      %p57 = por %p55, %p56
      %p58 = scmp.ne.s32.totalorder %s50, %s53
      %p59 = scmp.eq.s32.totalorder %s14, 0
      %p60 = por %p58, %p59
      %p61 = scmp.ne.s32.totalorder %s50, %s53
      %p62 = scmp.eq.s32.totalorder %s19, 1
      %p63 = por %p61, %p62
      %p64 = scmp.ne.s32.totalorder %s53, %s54
      %p65 = scmp.eq.s32.totalorder %s19, 0
      %p66 = por %p64, %p65
      %p67 = scmp.ne.s32.totalorder %s53, %s54
      %p68 = scmp.eq.s32.totalorder %s20, 1
      %p69 = por %p67, %p68
      %p71 = scmp.ne.s32.totalorder %s54, %s70
      %p72 = scmp.eq.s32.totalorder %s20, 0
      %p73 = por %p71, %p72
      %s75 = sadd.s32 %s74, 1
      %p78 = scmp.eq.s32.totalorder %s14, 1
      %p79 = scmp.ne.s32.totalorder %s74, %s76
      %p80 = scmp.eq.s32.totalorder %s14, 0
      %p81 = por %p79, %p80
      %p82 = scmp.ne.s32.totalorder %s74, %s76
      %p83 = scmp.eq.s32.totalorder %s19, 1
      %p84 = por %p82, %p83
      %p85 = scmp.ne.s32.totalorder %s76, %s77
      %p86 = scmp.eq.s32.totalorder %s19, 0
      %p87 = por %p85, %p86
      %p88 = scmp.ne.s32.totalorder %s76, %s77
      %p89 = scmp.eq.s32.totalorder %s20, 1
      %p90 = por %p88, %p89
      %p92 = scmp.ne.s32.totalorder %s77, %s91
      %p93 = scmp.eq.s32.totalorder %s20, 0
      %p94 = por %p92, %p93
      %s96 = sadd.s32 %s95, 1
      %p99 = scmp.eq.s32.totalorder %s14, 1
      %p100 = scmp.ne.s32.totalorder %s95, %s97
      %p101 = scmp.eq.s32.totalorder %s14, 0
      %p102 = por %p100, %p101
      %p103 = scmp.ne.s32.totalorder %s95, %s97
      %p104 = scmp.eq.s32.totalorder %s19, 1
      %p105 = por %p103, %p104
      %p106 = scmp.ne.s32.totalorder %s97, %s98
      %p107 = scmp.eq.s32.totalorder %s19, 0
      %p108 = por %p106, %p107
      %p109 = scmp.ne.s32.totalorder %s97, %s98
      %p110 = scmp.eq.s32.totalorder %s20, 1
      %p111 = por %p109, %p110
      %p113 = scmp.ne.s32.totalorder %s98, %s112
      %p114 = scmp.eq.s32.totalorder %s20, 0
      %p115 = por %p113, %p114
      %s117 = sadd.s32 %s116, 1
      %p120 = scmp.eq.s32.totalorder %s14, 1
      %p121 = scmp.ne.s32.totalorder %s116, %s118
      %p122 = scmp.eq.s32.totalorder %s14, 0
      %p123 = por %p121, %p122
      %p124 = scmp.ne.s32.totalorder %s116, %s118
      %p125 = scmp.eq.s32.totalorder %s19, 1
      %p126 = por %p124, %p125
      %p127 = scmp.ne.s32.totalorder %s118, %s119
      %p128 = scmp.eq.s32.totalorder %s19, 0
      %p129 = por %p127, %p128
      %p130 = scmp.ne.s32.totalorder %s118, %s119
      %p131 = scmp.eq.s32.totalorder %s20, 1
      %p132 = por %p130, %p131
      %p134 = scmp.ne.s32.totalorder %s119, %s133
      %p135 = scmp.eq.s32.totalorder %s20, 0
      %p136 = por %p134, %p135
      %s137 = ssub.s32 %s14, %s21
      %p138 = scmp.eq.s32.totalorder %s137, 0
      %s140 = sadd.s32 %s139, 1
      %s141 = scalar_select %p138, %s139, %s140
      %p144 = pneg %p138
      %p145 = scmp.eq.s32.totalorder %s14, 1
      %p146 = por %p144, %p145
      %p147 = scmp.ne.s32.totalorder %s139, %s142
      %p148 = scmp.eq.s32.totalorder %s14, 0
      %p149 = por %p147, %p148
      %p150 = scmp.ne.s32.totalorder %s139, %s142
      %p151 = scmp.eq.s32.totalorder %s19, 1
      %p152 = por %p150, %p151
      %p153 = scmp.ne.s32.totalorder %s142, %s143
      %p154 = scmp.eq.s32.totalorder %s19, 0
      %p155 = por %p153, %p154
      %p156 = scmp.ne.s32.totalorder %s142, %s143
      %p157 = scmp.eq.s32.totalorder %s20, 1
      %p158 = por %p156, %p157
      %p160 = scmp.ne.s32.totalorder %s143, %s159
      %p161 = scmp.eq.s32.totalorder %s20, 0
      %p162 = por %p160, %p161
      %p163 = scmp.le.s32.totalorder 1, %s14
      %p164 = scmp.lt.s32.totalorder %s14, 3
      %p165 = pnand %p163, %p164
      %p166 = pneg %p165
      // Predicated region
      $region9: #{tpu_custom_call.1} parent=5 // pred_check
        _
      $region10: #{tpu_custom_call.1} parent=5 // pred_check_branch
        %168 = sbr.rel (%p165) target = $region12
      $region11: #{tpu_custom_call.1} parent=5 // pred_region
        %s169 = ssub.s32 %s14, 1
        // Predicated region
        $region13: #{tpu_custom_call.1} parent=11 // pred_check
          %p170 = pneg %p87
        $region14: #{tpu_custom_call.1} parent=11 // pred_check_branch
          %172 = sbr.rel (%p170) target = $region16
        $region15: #{tpu_custom_call.1} parent=11 // pred_region
          _
        $region16: #{tpu_custom_call.1} parent=11 // pred_fallthru
          _
        // Predicated region
        $region17: #{tpu_custom_call.1} parent=11 // pred_check
          %p173 = pneg %p108
        $region18: #{tpu_custom_call.1} parent=11 // pred_check_branch
          %175 = sbr.rel (%p173) target = $region20
        $region19: #{tpu_custom_call.1} parent=11 // pred_region
          _
        $region20: #{tpu_custom_call.1} parent=11 // pred_fallthru
          _
        // Predicated region
        $region21: #{tpu_custom_call.1} parent=11 // pred_check
          %p176 = pneg %p129
        $region22: #{tpu_custom_call.1} parent=11 // pred_check_branch
          %178 = sbr.rel (%p176) target = $region24
        $region23: #{tpu_custom_call.1} parent=11 // pred_region
          _
        $region24: #{tpu_custom_call.1} parent=11 // pred_fallthru
          _
      $region12: #{tpu_custom_call.1} parent=5 // pred_fallthru
        _
      %p179 = scmp.lt.s32.totalorder %s14, 2
      // Predicated region
      $region25: #{tpu_custom_call.1} parent=5 // pred_check
        %p180 = pneg %p179
      $region26: #{tpu_custom_call.1} parent=5 // pred_check_branch
        %182 = sbr.rel (%p180) target = $region28
      $region27: #{tpu_custom_call.1} parent=5 // pred_region
        // Predicated region
        $region29: #{tpu_custom_call.1} parent=27 // pred_check
          %p183 = pneg %p34
        $region30: #{tpu_custom_call.1} parent=27 // pred_check_branch
          %185 = sbr.rel (%p183) target = $region32
        $region31: #{tpu_custom_call.1} parent=27 // pred_region
          %p186 = scmp.lt.s32.totalorder %s14, 1
          %s187 = scalar_select %p186, %s14, 1
          %s188 = smul.addr %s187, 32
          %s189 = smul.addr %s188, 8
          %s190 = scalar_lea.vmem %s0, %s189
        $region32: #{tpu_custom_call.1} parent=27 // pred_fallthru
          _
        // Predicated region
        $region33: #{tpu_custom_call.1} parent=27 // pred_check
          %p191 = pneg %p60
        $region34: #{tpu_custom_call.1} parent=27 // pred_check_branch
          %193 = sbr.rel (%p191) target = $region36
        $region35: #{tpu_custom_call.1} parent=27 // pred_region
          %p194 = scmp.lt.s32.totalorder %s14, 1
          %s195 = scalar_select %p194, %s14, 1
          %s196 = smul.addr %s195, 32
          %s197 = smul.addr %s196, 8
          %s198 = scalar_lea.vmem %s1, %s197
        $region36: #{tpu_custom_call.1} parent=27 // pred_fallthru
          _
      $region28: #{tpu_custom_call.1} parent=5 // pred_fallthru
        _
      %p199 = scmp.le.s32.totalorder 1, %s14
      %p200 = scmp.lt.s32.totalorder %s14, 3
      %p201 = pnand %p199, %p200
      %p202 = pneg %p201
      // Predicated region
      $region37: #{tpu_custom_call.1} parent=5 // pred_check
        _
      $region38: #{tpu_custom_call.1} parent=5 // pred_check_branch
        %204 = sbr.rel (%p201) target = $region40
      $region39: #{tpu_custom_call.1} parent=5 // pred_region
        %s205 = ssub.s32 %s14, 1
        %p206 = scmp.lt.s32.totalorder %s19, 1
        %s207 = scalar_select %p206, %s19, 1
        %s208 = smul.addr %s207, 32
        %s209 = smul.addr %s208, 8
        %s210 = scalar_lea.vmem %s0, %s209
        %p211 = pneg %p40
        %p212 = pneg %p37
        %p213 = scmp.lt.s32.totalorder %s19, 1
        %s214 = scalar_select %p213, %s19, 1
        %s215 = smul.addr %s214, 32
        %s216 = smul.addr %s215, 8
        %s217 = scalar_lea.vmem %s1, %s216
        %p218 = pneg %p66
        %p219 = pneg %p63
        %p220 = pneg %p87
        %p221 = pneg %p84
        %p222 = pneg %p108
        %p223 = pneg %p105
        %p224 = pneg %p129
        %p225 = pneg %p126
        %p226 = pneg %p155
        %p227 = pneg %p152
        %s228 = sand.u32 %s142, 1
        %s229 = scalar_lea.sflag [#allocation5], %s228
        %s230 = sand.u32 %s142, 1
        %s231 = smul.addr %s230, 256
        %s232 = scalar_lea.vmem [#allocation4], %s231
        %p233 = scmp.lt.s32.totalorder %s19, 1
        %s234 = scalar_select %p233, %s19, 1
        %s235 = smul.addr %s234, 32
        %s236 = smul.addr %s235, 8
        %s237 = scalar_lea.vmem %s0, %s236
        %p238 = scmp.lt.s32.totalorder %s19, 1
        %s239 = scalar_select %p238, %s19, 1
        %s240 = smul.addr %s239, 32
        %s241 = smul.addr %s240, 8
        %s242 = scalar_lea.vmem %s1, %s241
        %vm244 = vcmask 261120
        %245 = vst.msk [vmem:[#allocation2] sm:$0xff] %vm244, 0.0
        %246 = vst.msk [vmem:[#allocation2 + $0x8] sm:$0xff] %vm244, 0.0
        %vm247 = vcmask 254976
        %248 = vst.msk [vmem:[#allocation2 + $0x10] sm:$0x3] %vm247, 0.0
        %249 = vst.msk [vmem:[#allocation2 + $0x18] sm:$0xff] %vm244, 0.0
        %250 = vst.msk [vmem:[#allocation2 + $0x20] sm:$0xff] %vm244, 0.0
        %251 = vst.msk [vmem:[#allocation2 + $0x28] sm:$0x3] %vm247, 0.0
        %252 = vst.msk [vmem:[#allocation2 + $0x30] sm:$0xff] %vm244, 0.0
        %253 = vst.msk [vmem:[#allocation2 + $0x38] sm:$0xff] %vm244, 0.0
        %254 = vst.msk [vmem:[#allocation2 + $0x40] sm:$0x3] %vm247, 0.0
        %255 = vst.msk [vmem:[#allocation2 + $0x48] sm:$0xff] %vm244, 0.0
        %256 = vst.msk [vmem:[#allocation2 + $0x50] sm:$0xff] %vm244, 0.0
        %257 = vst.msk [vmem:[#allocation2 + $0x58] sm:$0x3] %vm247, 0.0
        %258 = vst.msk [vmem:[#allocation2 + $0x60] sm:$0xff] %vm244, 0.0
        %259 = vst.msk [vmem:[#allocation2 + $0x68] sm:$0xff] %vm244, 0.0
        %260 = vst.msk [vmem:[#allocation2 + $0x70] sm:$0x3] %vm247, 0.0
        %261 = vst.msk [vmem:[#allocation2 + $0x78] sm:$0xff] %vm244, 0.0
        %262 = vst.msk [vmem:[#allocation2 + $0x80] sm:$0xff] %vm244, 0.0
        %263 = vst.msk [vmem:[#allocation2 + $0x88] sm:$0x3] %vm247, 0.0
        %264 = vst.msk [vmem:[#allocation2 + $0x90] sm:$0xff] %vm244, 0.0
        %265 = vst.msk [vmem:[#allocation2 + $0x98] sm:$0xff] %vm244, 0.0
        %266 = vst.msk [vmem:[#allocation2 + $0xa0] sm:$0x3] %vm247, 0.0
        %267 = vst.msk [vmem:[#allocation2 + $0xa8] sm:$0xff] %vm244, 0.0
        %268 = vst.msk [vmem:[#allocation2 + $0xb0] sm:$0xff] %vm244, 0.0
        %269 = vst.msk [vmem:[#allocation2 + $0xb8] sm:$0x3] %vm247, 0.0
        %270 = vst.msk [vmem:[#allocation2 + $0xc0] sm:$0xff] %vm244, 0.0
        %271 = vst.msk [vmem:[#allocation2 + $0xc8] sm:$0xff] %vm244, 0.0
        %272 = vst.msk [vmem:[#allocation2 + $0xd0] sm:$0x3] %vm247, 0.0
        %273 = vst.msk [vmem:[#allocation2 + $0xd8] sm:$0xff] %vm244, 0.0
        %274 = vst.msk [vmem:[#allocation2 + $0xe0] sm:$0xff] %vm244, 0.0
        %275 = vst.msk [vmem:[#allocation2 + $0xe8] sm:$0x3] %vm247, 0.0
        %276 = vst.msk [vmem:[#allocation2 + $0xf0] sm:$0xff] %vm244, 0.0
        %277 = vst.msk [vmem:[#allocation2 + $0xf8] sm:$0xff] %vm244, 0.0
        %278 = vst.msk [vmem:[#allocation2 + $0x100] sm:$0x3] %vm247, 0.0
        %279 = vst.msk [vmem:[#allocation2 + $0x108] sm:$0xff] %vm244, 0.0
        %280 = vst.msk [vmem:[#allocation2 + $0x110] sm:$0xff] %vm244, 0.0
        %281 = vst.msk [vmem:[#allocation2 + $0x118] sm:$0x3] %vm247, 0.0
        %282 = vst.msk [vmem:[#allocation2 + $0x120] sm:$0xff] %vm244, 0.0
        %283 = vst.msk [vmem:[#allocation2 + $0x128] sm:$0xff] %vm244, 0.0
        %284 = vst.msk [vmem:[#allocation2 + $0x130] sm:$0x3] %vm247, 0.0
        %285 = vst.msk [vmem:[#allocation2 + $0x138] sm:$0xff] %vm244, 0.0
        %286 = vst.msk [vmem:[#allocation2 + $0x140] sm:$0xff] %vm244, 0.0
        %287 = vst.msk [vmem:[#allocation2 + $0x148] sm:$0x3] %vm247, 0.0
        %288 = vst.msk [vmem:[#allocation2 + $0x150] sm:$0xff] %vm244, 0.0
        %289 = vst.msk [vmem:[#allocation2 + $0x158] sm:$0xff] %vm244, 0.0
        %290 = vst.msk [vmem:[#allocation2 + $0x160] sm:$0x3] %vm247, 0.0
        %291 = vst.msk [vmem:[#allocation2 + $0x168] sm:$0xff] %vm244, 0.0
        %292 = vst.msk [vmem:[#allocation2 + $0x170] sm:$0xff] %vm244, 0.0
        %293 = vst.msk [vmem:[#allocation2 + $0x178] sm:$0x3] %vm247, 0.0
        %294 = vst.msk [vmem:[#allocation2 + $0x180] sm:$0xff] %vm244, 0.0
        %295 = vst.msk [vmem:[#allocation2 + $0x188] sm:$0xff] %vm244, 0.0
        %296 = vst.msk [vmem:[#allocation2 + $0x190] sm:$0x3] %vm247, 0.0
        %297 = vst.msk [vmem:[#allocation2 + $0x198] sm:$0xff] %vm244, 0.0
        %298 = vst.msk [vmem:[#allocation2 + $0x1a0] sm:$0xff] %vm244, 0.0
        %299 = vst.msk [vmem:[#allocation2 + $0x1a8] sm:$0x3] %vm247, 0.0
        %v300 = vld [vmem:[%s237] sm:$0xff]
        %v301 = vld [vmem:[%s237 + $0x8] sm:$0xff]
        %v302 = vld [vmem:[%s237 + $0x10] sm:$0xff]
        %v303 = vld [vmem:[%s237 + $0x18] sm:$0xff]
        %v304 = vld [vmem:[%s237 + $0x20] sm:$0xff]
        %v305 = vld [vmem:[%s237 + $0x28] sm:$0xff]
        %v306 = vld [vmem:[%s237 + $0x30] sm:$0xff]
        %v307 = vld [vmem:[%s237 + $0x38] sm:$0xff]
        %v308 = vld [vmem:[%s237 + $0x40] sm:$0xff]
        %v309 = vld [vmem:[%s237 + $0x48] sm:$0xff]
        %v310 = vld [vmem:[%s237 + $0x50] sm:$0xff]
        %v311 = vld [vmem:[%s237 + $0x58] sm:$0xff]
        %v312 = vld [vmem:[%s237 + $0x60] sm:$0xff]
        %v313 = vld [vmem:[%s237 + $0x68] sm:$0xff]
        %v314 = vld [vmem:[%s237 + $0x70] sm:$0xff]
        %v315 = vld [vmem:[%s237 + $0x78] sm:$0xff]
        %v316 = vld [vmem:[%s237 + $0x80] sm:$0xff]
        %v317 = vld [vmem:[%s237 + $0x88] sm:$0xff]
        %v318 = vld [vmem:[%s237 + $0x90] sm:$0xff]
        %v319 = vld [vmem:[%s237 + $0x98] sm:$0xff]
        %v320 = vld [vmem:[%s237 + $0xa0] sm:$0xff]
        %v321 = vld [vmem:[%s237 + $0xa8] sm:$0xff]
        %v322 = vld [vmem:[%s237 + $0xb0] sm:$0xff]
        %v323 = vld [vmem:[%s237 + $0xb8] sm:$0xff]
        %v324 = vld [vmem:[%s237 + $0xc0] sm:$0xff]
        %v325 = vld [vmem:[%s237 + $0xc8] sm:$0xff]
        %v326 = vld [vmem:[%s237 + $0xd0] sm:$0xff]
        %v327 = vld [vmem:[%s237 + $0xd8] sm:$0xff]
        %v328 = vld [vmem:[%s237 + $0xe0] sm:$0xff]
        %v329 = vld [vmem:[%s237 + $0xe8] sm:$0xff]
        %v330 = vld [vmem:[%s237 + $0xf0] sm:$0xff]
        %v331 = vld [vmem:[%s237 + $0xf8] sm:$0xff]
        %s332 = scalar_lea.vmem [#allocation2], 24
        %333 = vst.msk [vmem:[%s332 + $0x1] sm:$0xff] %vm244, %v300
        %334 = vst.msk [vmem:[%s332 + $0x9] sm:$0xff] %vm244, %v301
        %335 = vst.msk [vmem:[%s332 + $0x19] sm:$0xff] %vm244, %v302
        %336 = vst.msk [vmem:[%s332 + $0x21] sm:$0xff] %vm244, %v303
        %337 = vst.msk [vmem:[%s332 + $0x31] sm:$0xff] %vm244, %v304
        %338 = vst.msk [vmem:[%s332 + $0x39] sm:$0xff] %vm244, %v305
        %339 = vst.msk [vmem:[%s332 + $0x49] sm:$0xff] %vm244, %v306
        %340 = vst.msk [vmem:[%s332 + $0x51] sm:$0xff] %vm244, %v307
        %341 = vst.msk [vmem:[%s332 + $0x61] sm:$0xff] %vm244, %v308
        %342 = vst.msk [vmem:[%s332 + $0x69] sm:$0xff] %vm244, %v309
        %343 = vst.msk [vmem:[%s332 + $0x79] sm:$0xff] %vm244, %v310
        %344 = vst.msk [vmem:[%s332 + $0x81] sm:$0xff] %vm244, %v311
        %345 = vst.msk [vmem:[%s332 + $0x91] sm:$0xff] %vm244, %v312
        %346 = vst.msk [vmem:[%s332 + $0x99] sm:$0xff] %vm244, %v313
        %347 = vst.msk [vmem:[%s332 + $0xa9] sm:$0xff] %vm244, %v314
        %348 = vst.msk [vmem:[%s332 + $0xb1] sm:$0xff] %vm244, %v315
        %349 = vst.msk [vmem:[%s332 + $0xc1] sm:$0xff] %vm244, %v316
        %350 = vst.msk [vmem:[%s332 + $0xc9] sm:$0xff] %vm244, %v317
        %351 = vst.msk [vmem:[%s332 + $0xd9] sm:$0xff] %vm244, %v318
        %352 = vst.msk [vmem:[%s332 + $0xe1] sm:$0xff] %vm244, %v319
        %353 = vst.msk [vmem:[%s332 + $0xf1] sm:$0xff] %vm244, %v320
        %354 = vst.msk [vmem:[%s332 + $0xf9] sm:$0xff] %vm244, %v321
        %355 = vst.msk [vmem:[%s332 + $0x109] sm:$0xff] %vm244, %v322
        %356 = vst.msk [vmem:[%s332 + $0x111] sm:$0xff] %vm244, %v323
        %357 = vst.msk [vmem:[%s332 + $0x121] sm:$0xff] %vm244, %v324
        %358 = vst.msk [vmem:[%s332 + $0x129] sm:$0xff] %vm244, %v325
        %359 = vst.msk [vmem:[%s332 + $0x139] sm:$0xff] %vm244, %v326
        %360 = vst.msk [vmem:[%s332 + $0x141] sm:$0xff] %vm244, %v327
        %361 = vst.msk [vmem:[%s332 + $0x151] sm:$0xff] %vm244, %v328
        %362 = vst.msk [vmem:[%s332 + $0x159] sm:$0xff] %vm244, %v329
        %363 = vst.msk [vmem:[%s332 + $0x169] sm:$0xff] %vm244, %v330
        %364 = vst.msk [vmem:[%s332 + $0x171] sm:$0xff] %vm244, %v331
        %v365 = vld [vmem:[#allocation2] sm:$0xff]
        %v366 = vld [vmem:[#allocation2 + $0x8] sm:$0xff]
        %v367 = vld [vmem:[#allocation2 + $0x18] sm:$0xff]
        %v368 = vld [vmem:[#allocation2 + $0x20] sm:$0xff]
        %v369 = vld [vmem:[#allocation2 + $0x30] sm:$0xff]
        %v370 = vld [vmem:[#allocation2 + $0x38] sm:$0xff]
        %v371 = vld [vmem:[#allocation2 + $0x48] sm:$0xff]
        %v372 = vld [vmem:[#allocation2 + $0x50] sm:$0xff]
        %v373 = vld [vmem:[#allocation2 + $0x60] sm:$0xff]
        %v374 = vld [vmem:[#allocation2 + $0x68] sm:$0xff]
        %v375 = vld [vmem:[#allocation2 + $0x78] sm:$0xff]
        %v376 = vld [vmem:[#allocation2 + $0x80] sm:$0xff]
        %v377 = vld [vmem:[#allocation2 + $0x90] sm:$0xff]
        %v378 = vld [vmem:[#allocation2 + $0x98] sm:$0xff]
        %v379 = vld [vmem:[#allocation2 + $0xa8] sm:$0xff]
        %v380 = vld [vmem:[#allocation2 + $0xb0] sm:$0xff]
        %v381 = vld [vmem:[#allocation2 + $0xc0] sm:$0xff]
        %v382 = vld [vmem:[#allocation2 + $0xc8] sm:$0xff]
        %v383 = vld [vmem:[#allocation2 + $0xd8] sm:$0xff]
        %v384 = vld [vmem:[#allocation2 + $0xe0] sm:$0xff]
        %v385 = vld [vmem:[#allocation2 + $0xf0] sm:$0xff]
        %v386 = vld [vmem:[#allocation2 + $0xf8] sm:$0xff]
        %v387 = vld [vmem:[#allocation2 + $0x108] sm:$0xff]
        %v388 = vld [vmem:[#allocation2 + $0x110] sm:$0xff]
        %v389 = vld [vmem:[#allocation2 + $0x120] sm:$0xff]
        %v390 = vld [vmem:[#allocation2 + $0x128] sm:$0xff]
        %v391 = vld [vmem:[#allocation2 + $0x138] sm:$0xff]
        %v392 = vld [vmem:[#allocation2 + $0x140] sm:$0xff]
        %v393 = vld [vmem:[#allocation2 + $0x150] sm:$0xff]
        %v394 = vld [vmem:[#allocation2 + $0x158] sm:$0xff]
        %v395 = vld [vmem:[#allocation2 + $0x168] sm:$0xff]
        %v396 = vld [vmem:[#allocation2 + $0x170] sm:$0xff]
        %v397 = vpack.c.bf16 %v366, %v365
        %v398 = vpack.c.bf16 %v368, %v367
        %v399 = vpack.c.bf16 %v370, %v369
        %v400 = vpack.c.bf16 %v372, %v371
        %v401 = vpack.c.bf16 %v374, %v373
        %v402 = vpack.c.bf16 %v376, %v375
        %v403 = vpack.c.bf16 %v378, %v377
        %v404 = vpack.c.bf16 %v380, %v379
        %v405 = vpack.c.bf16 %v382, %v381
        %v406 = vpack.c.bf16 %v384, %v383
        %v407 = vpack.c.bf16 %v386, %v385
        %v408 = vpack.c.bf16 %v388, %v387
        %v409 = vpack.c.bf16 %v390, %v389
        %v410 = vpack.c.bf16 %v392, %v391
        %v411 = vpack.c.bf16 %v394, %v393
        %v412 = vpack.c.bf16 %v396, %v395
        %413 = vst.msk [vmem:[#allocation3] sm:$0xff] %vm244, %v397
        %414 = vst.msk [vmem:[#allocation3 + $0x18] sm:$0xff] %vm244, %v398
        %415 = vst.msk [vmem:[#allocation3 + $0x30] sm:$0xff] %vm244, %v399
        %416 = vst.msk [vmem:[#allocation3 + $0x48] sm:$0xff] %vm244, %v400
        %417 = vst.msk [vmem:[#allocation3 + $0x60] sm:$0xff] %vm244, %v401
        %418 = vst.msk [vmem:[#allocation3 + $0x78] sm:$0xff] %vm244, %v402
        %419 = vst.msk [vmem:[#allocation3 + $0x90] sm:$0xff] %vm244, %v403
        %420 = vst.msk [vmem:[#allocation3 + $0xa8] sm:$0xff] %vm244, %v404
        %421 = vst.msk [vmem:[#allocation3 + $0xc0] sm:$0xff] %vm244, %v405
        %422 = vst.msk [vmem:[#allocation3 + $0xd8] sm:$0xff] %vm244, %v406
        %423 = vst.msk [vmem:[#allocation3 + $0xf0] sm:$0xff] %vm244, %v407
        %424 = vst.msk [vmem:[#allocation3 + $0x108] sm:$0xff] %vm244, %v408
        %425 = vst.msk [vmem:[#allocation3 + $0x120] sm:$0xff] %vm244, %v409
        %426 = vst.msk [vmem:[#allocation3 + $0x138] sm:$0xff] %vm244, %v410
        %427 = vst.msk [vmem:[#allocation3 + $0x150] sm:$0xff] %vm244, %v411
        %428 = vst.msk [vmem:[#allocation3 + $0x168] sm:$0xff] %vm244, %v412
        %v429 = vld [vmem:[#allocation2 + $0x1] sm:$0xff]
        %v430 = vld [vmem:[#allocation2 + $0x9] sm:$0xff]
        %v431 = vld [vmem:[#allocation2 + $0x19] sm:$0xff]
        %v432 = vld [vmem:[#allocation2 + $0x21] sm:$0xff]
        %v433 = vld [vmem:[#allocation2 + $0x31] sm:$0xff]
        %v434 = vld [vmem:[#allocation2 + $0x39] sm:$0xff]
        %v435 = vld [vmem:[#allocation2 + $0x49] sm:$0xff]
        %v436 = vld [vmem:[#allocation2 + $0x51] sm:$0xff]
        %v437 = vld [vmem:[#allocation2 + $0x61] sm:$0xff]
        %v438 = vld [vmem:[#allocation2 + $0x69] sm:$0xff]
        %v439 = vld [vmem:[#allocation2 + $0x79] sm:$0xff]
        %v440 = vld [vmem:[#allocation2 + $0x81] sm:$0xff]
        %v441 = vld [vmem:[#allocation2 + $0x91] sm:$0xff]
        %v442 = vld [vmem:[#allocation2 + $0x99] sm:$0xff]
        %v443 = vld [vmem:[#allocation2 + $0xa9] sm:$0xff]
        %v444 = vld [vmem:[#allocation2 + $0xb1] sm:$0xff]
        %v445 = vld [vmem:[#allocation2 + $0xc1] sm:$0xff]
        %v446 = vld [vmem:[#allocation2 + $0xc9] sm:$0xff]
        %v447 = vld [vmem:[#allocation2 + $0xd9] sm:$0xff]
        %v448 = vld [vmem:[#allocation2 + $0xe1] sm:$0xff]
        %v449 = vld [vmem:[#allocation2 + $0xf1] sm:$0xff]
        %v450 = vld [vmem:[#allocation2 + $0xf9] sm:$0xff]
        %v451 = vld [vmem:[#allocation2 + $0x109] sm:$0xff]
        %v452 = vld [vmem:[#allocation2 + $0x111] sm:$0xff]
        %v453 = vld [vmem:[#allocation2 + $0x121] sm:$0xff]
        %v454 = vld [vmem:[#allocation2 + $0x129] sm:$0xff]
        %v455 = vld [vmem:[#allocation2 + $0x139] sm:$0xff]
        %v456 = vld [vmem:[#allocation2 + $0x141] sm:$0xff]
        %v457 = vld [vmem:[#allocation2 + $0x151] sm:$0xff]
        %v458 = vld [vmem:[#allocation2 + $0x159] sm:$0xff]
        %v459 = vld [vmem:[#allocation2 + $0x169] sm:$0xff]
        %v460 = vld [vmem:[#allocation2 + $0x171] sm:$0xff]
        %v461 = vpack.c.bf16 %v430, %v429
        %v462 = vpack.c.bf16 %v432, %v431
        %v463 = vpack.c.bf16 %v434, %v433
        %v464 = vpack.c.bf16 %v436, %v435
        %v465 = vpack.c.bf16 %v438, %v437
        %v466 = vpack.c.bf16 %v440, %v439
        %v467 = vpack.c.bf16 %v442, %v441
        %v468 = vpack.c.bf16 %v444, %v443
        %v469 = vpack.c.bf16 %v446, %v445
        %v470 = vpack.c.bf16 %v448, %v447
        %v471 = vpack.c.bf16 %v450, %v449
        %v472 = vpack.c.bf16 %v452, %v451
        %v473 = vpack.c.bf16 %v454, %v453
        %v474 = vpack.c.bf16 %v456, %v455
        %v475 = vpack.c.bf16 %v458, %v457
        %v476 = vpack.c.bf16 %v460, %v459
        %493 = vrot.lane.b32.xlu0 %v461, 32
        %v494 = vpop.permute.xlu0 %493
        %495 = vrot.lane.b32.xlu0 %v462, 32
        %v496 = vpop.permute.xlu0 %495
        %497 = vrot.lane.b32.xlu0 %v463, 32
        %v498 = vpop.permute.xlu0 %497
        %499 = vrot.lane.b32.xlu0 %v464, 32
        %v500 = vpop.permute.xlu0 %499
        %501 = vrot.lane.b32.xlu0 %v465, 32
        %v502 = vpop.permute.xlu0 %501
        %503 = vrot.lane.b32.xlu0 %v466, 32
        %v504 = vpop.permute.xlu0 %503
        %505 = vrot.lane.b32.xlu0 %v467, 32
        %v506 = vpop.permute.xlu0 %505
        %507 = vrot.lane.b32.xlu0 %v468, 32
        %v508 = vpop.permute.xlu0 %507
        %509 = vrot.lane.b32.xlu0 %v469, 32
        %v510 = vpop.permute.xlu0 %509
        %511 = vrot.lane.b32.xlu0 %v470, 32
        %v512 = vpop.permute.xlu0 %511
        %513 = vrot.lane.b32.xlu0 %v471, 32
        %v514 = vpop.permute.xlu0 %513
        %515 = vrot.lane.b32.xlu0 %v472, 32
        %v516 = vpop.permute.xlu0 %515
        %517 = vrot.lane.b32.xlu0 %v473, 32
        %v518 = vpop.permute.xlu0 %517
        %519 = vrot.lane.b32.xlu0 %v474, 32
        %v520 = vpop.permute.xlu0 %519
        %521 = vrot.lane.b32.xlu0 %v475, 32
        %v522 = vpop.permute.xlu0 %521
        %523 = vrot.lane.b32.xlu0 %v476, 32
        %v524 = vpop.permute.xlu0 %523
        %vm541 = vcmask 523520
        %542 = vst.msk [vmem:[#allocation3] sm:$0xff] %vm541, %v494
        %543 = vst.msk [vmem:[#allocation3 + $0x18] sm:$0xff] %vm541, %v496
        %544 = vst.msk [vmem:[#allocation3 + $0x30] sm:$0xff] %vm541, %v498
        %545 = vst.msk [vmem:[#allocation3 + $0x48] sm:$0xff] %vm541, %v500
        %546 = vst.msk [vmem:[#allocation3 + $0x60] sm:$0xff] %vm541, %v502
        %547 = vst.msk [vmem:[#allocation3 + $0x78] sm:$0xff] %vm541, %v504
        %548 = vst.msk [vmem:[#allocation3 + $0x90] sm:$0xff] %vm541, %v506
        %549 = vst.msk [vmem:[#allocation3 + $0xa8] sm:$0xff] %vm541, %v508
        %550 = vst.msk [vmem:[#allocation3 + $0xc0] sm:$0xff] %vm541, %v510
        %551 = vst.msk [vmem:[#allocation3 + $0xd8] sm:$0xff] %vm541, %v512
        %552 = vst.msk [vmem:[#allocation3 + $0xf0] sm:$0xff] %vm541, %v514
        %553 = vst.msk [vmem:[#allocation3 + $0x108] sm:$0xff] %vm541, %v516
        %554 = vst.msk [vmem:[#allocation3 + $0x120] sm:$0xff] %vm541, %v518
        %555 = vst.msk [vmem:[#allocation3 + $0x138] sm:$0xff] %vm541, %v520
        %556 = vst.msk [vmem:[#allocation3 + $0x150] sm:$0xff] %vm541, %v522
        %557 = vst.msk [vmem:[#allocation3 + $0x168] sm:$0xff] %vm541, %v524
        %v558 = vld [vmem:[#allocation2 + $0x2] sm:$0xff]
        %v559 = vld [vmem:[#allocation2 + $0xa] sm:$0xff]
        %v560 = vld [vmem:[#allocation2 + $0x1a] sm:$0xff]
        %v561 = vld [vmem:[#allocation2 + $0x22] sm:$0xff]
        %v562 = vld [vmem:[#allocation2 + $0x32] sm:$0xff]
        %v563 = vld [vmem:[#allocation2 + $0x3a] sm:$0xff]
        %v564 = vld [vmem:[#allocation2 + $0x4a] sm:$0xff]
        %v565 = vld [vmem:[#allocation2 + $0x52] sm:$0xff]
        %v566 = vld [vmem:[#allocation2 + $0x62] sm:$0xff]
        %v567 = vld [vmem:[#allocation2 + $0x6a] sm:$0xff]
        %v568 = vld [vmem:[#allocation2 + $0x7a] sm:$0xff]
        %v569 = vld [vmem:[#allocation2 + $0x82] sm:$0xff]
        %v570 = vld [vmem:[#allocation2 + $0x92] sm:$0xff]
        %v571 = vld [vmem:[#allocation2 + $0x9a] sm:$0xff]
        %v572 = vld [vmem:[#allocation2 + $0xaa] sm:$0xff]
        %v573 = vld [vmem:[#allocation2 + $0xb2] sm:$0xff]
        %v574 = vld [vmem:[#allocation2 + $0xc2] sm:$0xff]
        %v575 = vld [vmem:[#allocation2 + $0xca] sm:$0xff]
        %v576 = vld [vmem:[#allocation2 + $0xda] sm:$0xff]
        %v577 = vld [vmem:[#allocation2 + $0xe2] sm:$0xff]
        %v578 = vld [vmem:[#allocation2 + $0xf2] sm:$0xff]
        %v579 = vld [vmem:[#allocation2 + $0xfa] sm:$0xff]
        %v580 = vld [vmem:[#allocation2 + $0x10a] sm:$0xff]
        %v581 = vld [vmem:[#allocation2 + $0x112] sm:$0xff]
        %v582 = vld [vmem:[#allocation2 + $0x122] sm:$0xff]
        %v583 = vld [vmem:[#allocation2 + $0x12a] sm:$0xff]
        %v584 = vld [vmem:[#allocation2 + $0x13a] sm:$0xff]
        %v585 = vld [vmem:[#allocation2 + $0x142] sm:$0xff]
        %v586 = vld [vmem:[#allocation2 + $0x152] sm:$0xff]
        %v587 = vld [vmem:[#allocation2 + $0x15a] sm:$0xff]
        %v588 = vld [vmem:[#allocation2 + $0x16a] sm:$0xff]
        %v589 = vld [vmem:[#allocation2 + $0x172] sm:$0xff]
        %v590 = vpack.c.bf16 %v559, %v558
        %v591 = vpack.c.bf16 %v561, %v560
        %v592 = vpack.c.bf16 %v563, %v562
        %v593 = vpack.c.bf16 %v565, %v564
        %v594 = vpack.c.bf16 %v567, %v566
        %v595 = vpack.c.bf16 %v569, %v568
        %v596 = vpack.c.bf16 %v571, %v570
        %v597 = vpack.c.bf16 %v573, %v572
        %v598 = vpack.c.bf16 %v575, %v574
        %v599 = vpack.c.bf16 %v577, %v576
        %v600 = vpack.c.bf16 %v579, %v578
        %v601 = vpack.c.bf16 %v581, %v580
        %v602 = vpack.c.bf16 %v583, %v582
        %v603 = vpack.c.bf16 %v585, %v584
        %v604 = vpack.c.bf16 %v587, %v586
        %v605 = vpack.c.bf16 %v589, %v588
        %622 = vrot.lane.b32.xlu0 %v590, 64
        %v623 = vpop.permute.xlu0 %622
        %624 = vrot.lane.b32.xlu0 %v591, 64
        %v625 = vpop.permute.xlu0 %624
        %626 = vrot.lane.b32.xlu0 %v592, 64
        %v627 = vpop.permute.xlu0 %626
        %628 = vrot.lane.b32.xlu0 %v593, 64
        %v629 = vpop.permute.xlu0 %628
        %630 = vrot.lane.b32.xlu0 %v594, 64
        %v631 = vpop.permute.xlu0 %630
        %632 = vrot.lane.b32.xlu0 %v595, 64
        %v633 = vpop.permute.xlu0 %632
        %634 = vrot.lane.b32.xlu0 %v596, 64
        %v635 = vpop.permute.xlu0 %634
        %636 = vrot.lane.b32.xlu0 %v597, 64
        %v637 = vpop.permute.xlu0 %636
        %638 = vrot.lane.b32.xlu0 %v598, 64
        %v639 = vpop.permute.xlu0 %638
        %640 = vrot.lane.b32.xlu0 %v599, 64
        %v641 = vpop.permute.xlu0 %640
        %642 = vrot.lane.b32.xlu0 %v600, 64
        %v643 = vpop.permute.xlu0 %642
        %644 = vrot.lane.b32.xlu0 %v601, 64
        %v645 = vpop.permute.xlu0 %644
        %646 = vrot.lane.b32.xlu0 %v602, 64
        %v647 = vpop.permute.xlu0 %646
        %648 = vrot.lane.b32.xlu0 %v603, 64
        %v649 = vpop.permute.xlu0 %648
        %650 = vrot.lane.b32.xlu0 %v604, 64
        %v651 = vpop.permute.xlu0 %650
        %652 = vrot.lane.b32.xlu0 %v605, 64
        %v653 = vpop.permute.xlu0 %652
        %vm670 = vcmask 785920
        %671 = vst.msk [vmem:[#allocation3] sm:$0xff] %vm670, %v623
        %672 = vst.msk [vmem:[#allocation3 + $0x18] sm:$0xff] %vm670, %v625
        %673 = vst.msk [vmem:[#allocation3 + $0x30] sm:$0xff] %vm670, %v627
        %674 = vst.msk [vmem:[#allocation3 + $0x48] sm:$0xff] %vm670, %v629
        %675 = vst.msk [vmem:[#allocation3 + $0x60] sm:$0xff] %vm670, %v631
        %676 = vst.msk [vmem:[#allocation3 + $0x78] sm:$0xff] %vm670, %v633
        %677 = vst.msk [vmem:[#allocation3 + $0x90] sm:$0xff] %vm670, %v635
        %678 = vst.msk [vmem:[#allocation3 + $0xa8] sm:$0xff] %vm670, %v637
        %679 = vst.msk [vmem:[#allocation3 + $0xc0] sm:$0xff] %vm670, %v639
        %680 = vst.msk [vmem:[#allocation3 + $0xd8] sm:$0xff] %vm670, %v641
        %681 = vst.msk [vmem:[#allocation3 + $0xf0] sm:$0xff] %vm670, %v643
        %682 = vst.msk [vmem:[#allocation3 + $0x108] sm:$0xff] %vm670, %v645
        %683 = vst.msk [vmem:[#allocation3 + $0x120] sm:$0xff] %vm670, %v647
        %684 = vst.msk [vmem:[#allocation3 + $0x138] sm:$0xff] %vm670, %v649
        %685 = vst.msk [vmem:[#allocation3 + $0x150] sm:$0xff] %vm670, %v651
        %686 = vst.msk [vmem:[#allocation3 + $0x168] sm:$0xff] %vm670, %v653
        %v687 = vld [vmem:[%s332] sm:$0xff]
        %v688 = vld [vmem:[%s332 + $0x8] sm:$0xff]
        %v689 = vld [vmem:[%s332 + $0x18] sm:$0xff]
        %v690 = vld [vmem:[%s332 + $0x20] sm:$0xff]
        %v691 = vld [vmem:[%s332 + $0x30] sm:$0xff]
        %v692 = vld [vmem:[%s332 + $0x38] sm:$0xff]
        %v693 = vld [vmem:[%s332 + $0x48] sm:$0xff]
        %v694 = vld [vmem:[%s332 + $0x50] sm:$0xff]
        %v695 = vld [vmem:[%s332 + $0x60] sm:$0xff]
        %v696 = vld [vmem:[%s332 + $0x68] sm:$0xff]
        %v697 = vld [vmem:[%s332 + $0x78] sm:$0xff]
        %v698 = vld [vmem:[%s332 + $0x80] sm:$0xff]
        %v699 = vld [vmem:[%s332 + $0x90] sm:$0xff]
        %v700 = vld [vmem:[%s332 + $0x98] sm:$0xff]
        %v701 = vld [vmem:[%s332 + $0xa8] sm:$0xff]
        %v702 = vld [vmem:[%s332 + $0xb0] sm:$0xff]
        %v703 = vld [vmem:[%s332 + $0xc0] sm:$0xff]
        %v704 = vld [vmem:[%s332 + $0xc8] sm:$0xff]
        %v705 = vld [vmem:[%s332 + $0xd8] sm:$0xff]
        %v706 = vld [vmem:[%s332 + $0xe0] sm:$0xff]
        %v707 = vld [vmem:[%s332 + $0xf0] sm:$0xff]
        %v708 = vld [vmem:[%s332 + $0xf8] sm:$0xff]
        %v709 = vld [vmem:[%s332 + $0x108] sm:$0xff]
        %v710 = vld [vmem:[%s332 + $0x110] sm:$0xff]
        %v711 = vld [vmem:[%s332 + $0x120] sm:$0xff]
        %v712 = vld [vmem:[%s332 + $0x128] sm:$0xff]
        %v713 = vld [vmem:[%s332 + $0x138] sm:$0xff]
        %v714 = vld [vmem:[%s332 + $0x140] sm:$0xff]
        %v715 = vld [vmem:[%s332 + $0x150] sm:$0xff]
        %v716 = vld [vmem:[%s332 + $0x158] sm:$0xff]
        %v717 = vld [vmem:[%s332 + $0x168] sm:$0xff]
        %v718 = vld [vmem:[%s332 + $0x170] sm:$0xff]
        %v719 = vpack.c.bf16 %v688, %v687
        %v720 = vpack.c.bf16 %v690, %v689
        %v721 = vpack.c.bf16 %v692, %v691
        %v722 = vpack.c.bf16 %v694, %v693
        %v723 = vpack.c.bf16 %v696, %v695
        %v724 = vpack.c.bf16 %v698, %v697
        %v725 = vpack.c.bf16 %v700, %v699
        %v726 = vpack.c.bf16 %v702, %v701
        %v727 = vpack.c.bf16 %v704, %v703
        %v728 = vpack.c.bf16 %v706, %v705
        %v729 = vpack.c.bf16 %v708, %v707
        %v730 = vpack.c.bf16 %v710, %v709
        %v731 = vpack.c.bf16 %v712, %v711
        %v732 = vpack.c.bf16 %v714, %v713
        %v733 = vpack.c.bf16 %v716, %v715
        %v734 = vpack.c.bf16 %v718, %v717
        %751 = vrot.lane.b32.xlu0 %v719, 96
        %v752 = vpop.permute.xlu0 %751
        %753 = vrot.lane.b32.xlu0 %v720, 96
        %v754 = vpop.permute.xlu0 %753
        %755 = vrot.lane.b32.xlu0 %v721, 96
        %v756 = vpop.permute.xlu0 %755
        %757 = vrot.lane.b32.xlu0 %v722, 96
        %v758 = vpop.permute.xlu0 %757
        %759 = vrot.lane.b32.xlu0 %v723, 96
        %v760 = vpop.permute.xlu0 %759
        %761 = vrot.lane.b32.xlu0 %v724, 96
        %v762 = vpop.permute.xlu0 %761
        %763 = vrot.lane.b32.xlu0 %v725, 96
        %v764 = vpop.permute.xlu0 %763
        %765 = vrot.lane.b32.xlu0 %v726, 96
        %v766 = vpop.permute.xlu0 %765
        %767 = vrot.lane.b32.xlu0 %v727, 96
        %v768 = vpop.permute.xlu0 %767
        %769 = vrot.lane.b32.xlu0 %v728, 96
        %v770 = vpop.permute.xlu0 %769
        %771 = vrot.lane.b32.xlu0 %v729, 96
        %v772 = vpop.permute.xlu0 %771
        %773 = vrot.lane.b32.xlu0 %v730, 96
        %v774 = vpop.permute.xlu0 %773
        %775 = vrot.lane.b32.xlu0 %v731, 96
        %v776 = vpop.permute.xlu0 %775
        %777 = vrot.lane.b32.xlu0 %v732, 96
        %v778 = vpop.permute.xlu0 %777
        %779 = vrot.lane.b32.xlu0 %v733, 96
        %v780 = vpop.permute.xlu0 %779
        %781 = vrot.lane.b32.xlu0 %v734, 96
        %v782 = vpop.permute.xlu0 %781
        %vm799 = vcmask 1048320
        %800 = vst.msk [vmem:[#allocation3] sm:$0xff] %vm799, %v752
        %801 = vst.msk [vmem:[#allocation3 + $0x18] sm:$0xff] %vm799, %v754
        %802 = vst.msk [vmem:[#allocation3 + $0x30] sm:$0xff] %vm799, %v756
        %803 = vst.msk [vmem:[#allocation3 + $0x48] sm:$0xff] %vm799, %v758
        %804 = vst.msk [vmem:[#allocation3 + $0x60] sm:$0xff] %vm799, %v760
        %805 = vst.msk [vmem:[#allocation3 + $0x78] sm:$0xff] %vm799, %v762
        %806 = vst.msk [vmem:[#allocation3 + $0x90] sm:$0xff] %vm799, %v764
        %807 = vst.msk [vmem:[#allocation3 + $0xa8] sm:$0xff] %vm799, %v766
        %808 = vst.msk [vmem:[#allocation3 + $0xc0] sm:$0xff] %vm799, %v768
        %809 = vst.msk [vmem:[#allocation3 + $0xd8] sm:$0xff] %vm799, %v770
        %810 = vst.msk [vmem:[#allocation3 + $0xf0] sm:$0xff] %vm799, %v772
        %811 = vst.msk [vmem:[#allocation3 + $0x108] sm:$0xff] %vm799, %v774
        %812 = vst.msk [vmem:[#allocation3 + $0x120] sm:$0xff] %vm799, %v776
        %813 = vst.msk [vmem:[#allocation3 + $0x138] sm:$0xff] %vm799, %v778
        %814 = vst.msk [vmem:[#allocation3 + $0x150] sm:$0xff] %vm799, %v780
        %815 = vst.msk [vmem:[#allocation3 + $0x168] sm:$0xff] %vm799, %v782
        %v816 = vld [vmem:[%s332 + $0x1] sm:$0xff]
        %v817 = vld [vmem:[%s332 + $0x9] sm:$0xff]
        %v818 = vld [vmem:[%s332 + $0x19] sm:$0xff]
        %v819 = vld [vmem:[%s332 + $0x21] sm:$0xff]
        %v820 = vld [vmem:[%s332 + $0x31] sm:$0xff]
        %v821 = vld [vmem:[%s332 + $0x39] sm:$0xff]
        %v822 = vld [vmem:[%s332 + $0x49] sm:$0xff]
        %v823 = vld [vmem:[%s332 + $0x51] sm:$0xff]
        %v824 = vld [vmem:[%s332 + $0x61] sm:$0xff]
        %v825 = vld [vmem:[%s332 + $0x69] sm:$0xff]
        %v826 = vld [vmem:[%s332 + $0x79] sm:$0xff]
        %v827 = vld [vmem:[%s332 + $0x81] sm:$0xff]
        %v828 = vld [vmem:[%s332 + $0x91] sm:$0xff]
        %v829 = vld [vmem:[%s332 + $0x99] sm:$0xff]
        %v830 = vld [vmem:[%s332 + $0xa9] sm:$0xff]
        %v831 = vld [vmem:[%s332 + $0xb1] sm:$0xff]
        %v832 = vld [vmem:[%s332 + $0xc1] sm:$0xff]
        %v833 = vld [vmem:[%s332 + $0xc9] sm:$0xff]
        %v834 = vld [vmem:[%s332 + $0xd9] sm:$0xff]
        %v835 = vld [vmem:[%s332 + $0xe1] sm:$0xff]
        %v836 = vld [vmem:[%s332 + $0xf1] sm:$0xff]
        %v837 = vld [vmem:[%s332 + $0xf9] sm:$0xff]
        %v838 = vld [vmem:[%s332 + $0x109] sm:$0xff]
        %v839 = vld [vmem:[%s332 + $0x111] sm:$0xff]
        %v840 = vld [vmem:[%s332 + $0x121] sm:$0xff]
        %v841 = vld [vmem:[%s332 + $0x129] sm:$0xff]
        %v842 = vld [vmem:[%s332 + $0x139] sm:$0xff]
        %v843 = vld [vmem:[%s332 + $0x141] sm:$0xff]
        %v844 = vld [vmem:[%s332 + $0x151] sm:$0xff]
        %v845 = vld [vmem:[%s332 + $0x159] sm:$0xff]
        %v846 = vld [vmem:[%s332 + $0x169] sm:$0xff]
        %v847 = vld [vmem:[%s332 + $0x171] sm:$0xff]
        %v848 = vpack.c.bf16 %v817, %v816
        %v849 = vpack.c.bf16 %v819, %v818
        %v850 = vpack.c.bf16 %v821, %v820
        %v851 = vpack.c.bf16 %v823, %v822
        %v852 = vpack.c.bf16 %v825, %v824
        %v853 = vpack.c.bf16 %v827, %v826
        %v854 = vpack.c.bf16 %v829, %v828
        %v855 = vpack.c.bf16 %v831, %v830
        %v856 = vpack.c.bf16 %v833, %v832
        %v857 = vpack.c.bf16 %v835, %v834
        %v858 = vpack.c.bf16 %v837, %v836
        %v859 = vpack.c.bf16 %v839, %v838
        %v860 = vpack.c.bf16 %v841, %v840
        %v861 = vpack.c.bf16 %v843, %v842
        %v862 = vpack.c.bf16 %v845, %v844
        %v863 = vpack.c.bf16 %v847, %v846
        %864 = vst.msk [vmem:[#allocation3 + $0x8] sm:$0xff] %vm244, %v848
        %865 = vst.msk [vmem:[#allocation3 + $0x20] sm:$0xff] %vm244, %v849
        %866 = vst.msk [vmem:[#allocation3 + $0x38] sm:$0xff] %vm244, %v850
        %867 = vst.msk [vmem:[#allocation3 + $0x50] sm:$0xff] %vm244, %v851
        %868 = vst.msk [vmem:[#allocation3 + $0x68] sm:$0xff] %vm244, %v852
        %869 = vst.msk [vmem:[#allocation3 + $0x80] sm:$0xff] %vm244, %v853
        %870 = vst.msk [vmem:[#allocation3 + $0x98] sm:$0xff] %vm244, %v854
        %871 = vst.msk [vmem:[#allocation3 + $0xb0] sm:$0xff] %vm244, %v855
        %872 = vst.msk [vmem:[#allocation3 + $0xc8] sm:$0xff] %vm244, %v856
        %873 = vst.msk [vmem:[#allocation3 + $0xe0] sm:$0xff] %vm244, %v857
        %874 = vst.msk [vmem:[#allocation3 + $0xf8] sm:$0xff] %vm244, %v858
        %875 = vst.msk [vmem:[#allocation3 + $0x110] sm:$0xff] %vm244, %v859
        %876 = vst.msk [vmem:[#allocation3 + $0x128] sm:$0xff] %vm244, %v860
        %877 = vst.msk [vmem:[#allocation3 + $0x140] sm:$0xff] %vm244, %v861
        %878 = vst.msk [vmem:[#allocation3 + $0x158] sm:$0xff] %vm244, %v862
        %879 = vst.msk [vmem:[#allocation3 + $0x170] sm:$0xff] %vm244, %v863
        %v880 = vld [vmem:[%s332 + $0x2] sm:$0xff]
        %v881 = vld [vmem:[%s332 + $0xa] sm:$0xff]
        %v882 = vld [vmem:[%s332 + $0x1a] sm:$0xff]
        %v883 = vld [vmem:[%s332 + $0x22] sm:$0xff]
        %v884 = vld [vmem:[%s332 + $0x32] sm:$0xff]
        %v885 = vld [vmem:[%s332 + $0x3a] sm:$0xff]
        %v886 = vld [vmem:[%s332 + $0x4a] sm:$0xff]
        %v887 = vld [vmem:[%s332 + $0x52] sm:$0xff]
        %v888 = vld [vmem:[%s332 + $0x62] sm:$0xff]
        %v889 = vld [vmem:[%s332 + $0x6a] sm:$0xff]
        %v890 = vld [vmem:[%s332 + $0x7a] sm:$0xff]
        %v891 = vld [vmem:[%s332 + $0x82] sm:$0xff]
        %v892 = vld [vmem:[%s332 + $0x92] sm:$0xff]
        %v893 = vld [vmem:[%s332 + $0x9a] sm:$0xff]
        %v894 = vld [vmem:[%s332 + $0xaa] sm:$0xff]
        %v895 = vld [vmem:[%s332 + $0xb2] sm:$0xff]
        %v896 = vld [vmem:[%s332 + $0xc2] sm:$0xff]
        %v897 = vld [vmem:[%s332 + $0xca] sm:$0xff]
        %v898 = vld [vmem:[%s332 + $0xda] sm:$0xff]
        %v899 = vld [vmem:[%s332 + $0xe2] sm:$0xff]
        %v900 = vld [vmem:[%s332 + $0xf2] sm:$0xff]
        %v901 = vld [vmem:[%s332 + $0xfa] sm:$0xff]
        %v902 = vld [vmem:[%s332 + $0x10a] sm:$0xff]
        %v903 = vld [vmem:[%s332 + $0x112] sm:$0xff]
        %v904 = vld [vmem:[%s332 + $0x122] sm:$0xff]
        %v905 = vld [vmem:[%s332 + $0x12a] sm:$0xff]
        %v906 = vld [vmem:[%s332 + $0x13a] sm:$0xff]
        %v907 = vld [vmem:[%s332 + $0x142] sm:$0xff]
        %v908 = vld [vmem:[%s332 + $0x152] sm:$0xff]
        %v909 = vld [vmem:[%s332 + $0x15a] sm:$0xff]
        %v910 = vld [vmem:[%s332 + $0x16a] sm:$0xff]
        %v911 = vld [vmem:[%s332 + $0x172] sm:$0xff]
        %v912 = vpack.c.bf16 %v881, %v880
        %v913 = vpack.c.bf16 %v883, %v882
        %v914 = vpack.c.bf16 %v885, %v884
        %v915 = vpack.c.bf16 %v887, %v886
        %v916 = vpack.c.bf16 %v889, %v888
        %v917 = vpack.c.bf16 %v891, %v890
        %v918 = vpack.c.bf16 %v893, %v892
        %v919 = vpack.c.bf16 %v895, %v894
        %v920 = vpack.c.bf16 %v897, %v896
        %v921 = vpack.c.bf16 %v899, %v898
        %v922 = vpack.c.bf16 %v901, %v900
        %v923 = vpack.c.bf16 %v903, %v902
        %v924 = vpack.c.bf16 %v905, %v904
        %v925 = vpack.c.bf16 %v907, %v906
        %v926 = vpack.c.bf16 %v909, %v908
        %v927 = vpack.c.bf16 %v911, %v910
        %944 = vrot.lane.b32.xlu0 %v912, 32
        %v945 = vpop.permute.xlu0 %944
        %946 = vrot.lane.b32.xlu0 %v913, 32
        %v947 = vpop.permute.xlu0 %946
        %948 = vrot.lane.b32.xlu0 %v914, 32
        %v949 = vpop.permute.xlu0 %948
        %950 = vrot.lane.b32.xlu0 %v915, 32
        %v951 = vpop.permute.xlu0 %950
        %952 = vrot.lane.b32.xlu0 %v916, 32
        %v953 = vpop.permute.xlu0 %952
        %954 = vrot.lane.b32.xlu0 %v917, 32
        %v955 = vpop.permute.xlu0 %954
        %956 = vrot.lane.b32.xlu0 %v918, 32
        %v957 = vpop.permute.xlu0 %956
        %958 = vrot.lane.b32.xlu0 %v919, 32
        %v959 = vpop.permute.xlu0 %958
        %960 = vrot.lane.b32.xlu0 %v920, 32
        %v961 = vpop.permute.xlu0 %960
        %962 = vrot.lane.b32.xlu0 %v921, 32
        %v963 = vpop.permute.xlu0 %962
        %964 = vrot.lane.b32.xlu0 %v922, 32
        %v965 = vpop.permute.xlu0 %964
        %966 = vrot.lane.b32.xlu0 %v923, 32
        %v967 = vpop.permute.xlu0 %966
        %968 = vrot.lane.b32.xlu0 %v924, 32
        %v969 = vpop.permute.xlu0 %968
        %970 = vrot.lane.b32.xlu0 %v925, 32
        %v971 = vpop.permute.xlu0 %970
        %972 = vrot.lane.b32.xlu0 %v926, 32
        %v973 = vpop.permute.xlu0 %972
        %974 = vrot.lane.b32.xlu0 %v927, 32
        %v975 = vpop.permute.xlu0 %974
        %992 = vst.msk [vmem:[#allocation3 + $0x8] sm:$0xff] %vm541, %v945
        %993 = vst.msk [vmem:[#allocation3 + $0x20] sm:$0xff] %vm541, %v947
        %994 = vst.msk [vmem:[#allocation3 + $0x38] sm:$0xff] %vm541, %v949
        %995 = vst.msk [vmem:[#allocation3 + $0x50] sm:$0xff] %vm541, %v951
        %996 = vst.msk [vmem:[#allocation3 + $0x68] sm:$0xff] %vm541, %v953
        %997 = vst.msk [vmem:[#allocation3 + $0x80] sm:$0xff] %vm541, %v955
        %998 = vst.msk [vmem:[#allocation3 + $0x98] sm:$0xff] %vm541, %v957
        %999 = vst.msk [vmem:[#allocation3 + $0xb0] sm:$0xff] %vm541, %v959
        %1000 = vst.msk [vmem:[#allocation3 + $0xc8] sm:$0xff] %vm541, %v961
        %1001 = vst.msk [vmem:[#allocation3 + $0xe0] sm:$0xff] %vm541, %v963
        %1002 = vst.msk [vmem:[#allocation3 + $0xf8] sm:$0xff] %vm541, %v965
        %1003 = vst.msk [vmem:[#allocation3 + $0x110] sm:$0xff] %vm541, %v967
        %1004 = vst.msk [vmem:[#allocation3 + $0x128] sm:$0xff] %vm541, %v969
        %1005 = vst.msk [vmem:[#allocation3 + $0x140] sm:$0xff] %vm541, %v971
        %1006 = vst.msk [vmem:[#allocation3 + $0x158] sm:$0xff] %vm541, %v973
        %1007 = vst.msk [vmem:[#allocation3 + $0x170] sm:$0xff] %vm541, %v975
        %s1008 = scalar_lea.vmem [#allocation2], 48
        %v1009 = vld [vmem:[%s1008] sm:$0xff]
        %v1010 = vld [vmem:[%s1008 + $0x8] sm:$0xff]
        %v1011 = vld [vmem:[%s1008 + $0x18] sm:$0xff]
        %v1012 = vld [vmem:[%s1008 + $0x20] sm:$0xff]
        %v1013 = vld [vmem:[%s1008 + $0x30] sm:$0xff]
        %v1014 = vld [vmem:[%s1008 + $0x38] sm:$0xff]
        %v1015 = vld [vmem:[%s1008 + $0x48] sm:$0xff]
        %v1016 = vld [vmem:[%s1008 + $0x50] sm:$0xff]
        %v1017 = vld [vmem:[%s1008 + $0x60] sm:$0xff]
        %v1018 = vld [vmem:[%s1008 + $0x68] sm:$0xff]
        %v1019 = vld [vmem:[%s1008 + $0x78] sm:$0xff]
        %v1020 = vld [vmem:[%s1008 + $0x80] sm:$0xff]
        %v1021 = vld [vmem:[%s1008 + $0x90] sm:$0xff]
        %v1022 = vld [vmem:[%s1008 + $0x98] sm:$0xff]
        %v1023 = vld [vmem:[%s1008 + $0xa8] sm:$0xff]
        %v1024 = vld [vmem:[%s1008 + $0xb0] sm:$0xff]
        %v1025 = vld [vmem:[%s1008 + $0xc0] sm:$0xff]
        %v1026 = vld [vmem:[%s1008 + $0xc8] sm:$0xff]
        %v1027 = vld [vmem:[%s1008 + $0xd8] sm:$0xff]
        %v1028 = vld [vmem:[%s1008 + $0xe0] sm:$0xff]
        %v1029 = vld [vmem:[%s1008 + $0xf0] sm:$0xff]
        %v1030 = vld [vmem:[%s1008 + $0xf8] sm:$0xff]
        %v1031 = vld [vmem:[%s1008 + $0x108] sm:$0xff]
        %v1032 = vld [vmem:[%s1008 + $0x110] sm:$0xff]
        %v1033 = vld [vmem:[%s1008 + $0x120] sm:$0xff]
        %v1034 = vld [vmem:[%s1008 + $0x128] sm:$0xff]
        %v1035 = vld [vmem:[%s1008 + $0x138] sm:$0xff]
        %v1036 = vld [vmem:[%s1008 + $0x140] sm:$0xff]
        %v1037 = vld [vmem:[%s1008 + $0x150] sm:$0xff]
        %v1038 = vld [vmem:[%s1008 + $0x158] sm:$0xff]
        %v1039 = vld [vmem:[%s1008 + $0x168] sm:$0xff]
        %v1040 = vld [vmem:[%s1008 + $0x170] sm:$0xff]
        %v1041 = vpack.c.bf16 %v1010, %v1009
        %v1042 = vpack.c.bf16 %v1012, %v1011
        %v1043 = vpack.c.bf16 %v1014, %v1013
        %v1044 = vpack.c.bf16 %v1016, %v1015
        %v1045 = vpack.c.bf16 %v1018, %v1017
        %v1046 = vpack.c.bf16 %v1020, %v1019
        %v1047 = vpack.c.bf16 %v1022, %v1021
        %v1048 = vpack.c.bf16 %v1024, %v1023
        %v1049 = vpack.c.bf16 %v1026, %v1025
        %v1050 = vpack.c.bf16 %v1028, %v1027
        %v1051 = vpack.c.bf16 %v1030, %v1029
        %v1052 = vpack.c.bf16 %v1032, %v1031
        %v1053 = vpack.c.bf16 %v1034, %v1033
        %v1054 = vpack.c.bf16 %v1036, %v1035
        %v1055 = vpack.c.bf16 %v1038, %v1037
        %v1056 = vpack.c.bf16 %v1040, %v1039
        %1073 = vrot.lane.b32.xlu0 %v1041, 64
        %v1074 = vpop.permute.xlu0 %1073
        %1075 = vrot.lane.b32.xlu0 %v1042, 64
        %v1076 = vpop.permute.xlu0 %1075
        %1077 = vrot.lane.b32.xlu0 %v1043, 64
        %v1078 = vpop.permute.xlu0 %1077
        %1079 = vrot.lane.b32.xlu0 %v1044, 64
        %v1080 = vpop.permute.xlu0 %1079
        %1081 = vrot.lane.b32.xlu0 %v1045, 64
        %v1082 = vpop.permute.xlu0 %1081
        %1083 = vrot.lane.b32.xlu0 %v1046, 64
        %v1084 = vpop.permute.xlu0 %1083
        %1085 = vrot.lane.b32.xlu0 %v1047, 64
        %v1086 = vpop.permute.xlu0 %1085
        %1087 = vrot.lane.b32.xlu0 %v1048, 64
        %v1088 = vpop.permute.xlu0 %1087
        %1089 = vrot.lane.b32.xlu0 %v1049, 64
        %v1090 = vpop.permute.xlu0 %1089
        %1091 = vrot.lane.b32.xlu0 %v1050, 64
        %v1092 = vpop.permute.xlu0 %1091
        %1093 = vrot.lane.b32.xlu0 %v1051, 64
        %v1094 = vpop.permute.xlu0 %1093
        %1095 = vrot.lane.b32.xlu0 %v1052, 64
        %v1096 = vpop.permute.xlu0 %1095
        %1097 = vrot.lane.b32.xlu0 %v1053, 64
        %v1098 = vpop.permute.xlu0 %1097
        %1099 = vrot.lane.b32.xlu0 %v1054, 64
        %v1100 = vpop.permute.xlu0 %1099
        %1101 = vrot.lane.b32.xlu0 %v1055, 64
        %v1102 = vpop.permute.xlu0 %1101
        %1103 = vrot.lane.b32.xlu0 %v1056, 64
        %v1104 = vpop.permute.xlu0 %1103
        %1121 = vst.msk [vmem:[#allocation3 + $0x8] sm:$0xff] %vm670, %v1074
        %1122 = vst.msk [vmem:[#allocation3 + $0x20] sm:$0xff] %vm670, %v1076
        %1123 = vst.msk [vmem:[#allocation3 + $0x38] sm:$0xff] %vm670, %v1078
        %1124 = vst.msk [vmem:[#allocation3 + $0x50] sm:$0xff] %vm670, %v1080
        %1125 = vst.msk [vmem:[#allocation3 + $0x68] sm:$0xff] %vm670, %v1082
        %1126 = vst.msk [vmem:[#allocation3 + $0x80] sm:$0xff] %vm670, %v1084
        %1127 = vst.msk [vmem:[#allocation3 + $0x98] sm:$0xff] %vm670, %v1086
        %1128 = vst.msk [vmem:[#allocation3 + $0xb0] sm:$0xff] %vm670, %v1088
        %1129 = vst.msk [vmem:[#allocation3 + $0xc8] sm:$0xff] %vm670, %v1090
        %1130 = vst.msk [vmem:[#allocation3 + $0xe0] sm:$0xff] %vm670, %v1092
        %1131 = vst.msk [vmem:[#allocation3 + $0xf8] sm:$0xff] %vm670, %v1094
        %1132 = vst.msk [vmem:[#allocation3 + $0x110] sm:$0xff] %vm670, %v1096
        %1133 = vst.msk [vmem:[#allocation3 + $0x128] sm:$0xff] %vm670, %v1098
        %1134 = vst.msk [vmem:[#allocation3 + $0x140] sm:$0xff] %vm670, %v1100
        %1135 = vst.msk [vmem:[#allocation3 + $0x158] sm:$0xff] %vm670, %v1102
        %1136 = vst.msk [vmem:[#allocation3 + $0x170] sm:$0xff] %vm670, %v1104
        %v1137 = vld [vmem:[%s1008 + $0x1] sm:$0xff]
        %v1138 = vld [vmem:[%s1008 + $0x9] sm:$0xff]
        %v1139 = vld [vmem:[%s1008 + $0x19] sm:$0xff]
        %v1140 = vld [vmem:[%s1008 + $0x21] sm:$0xff]
        %v1141 = vld [vmem:[%s1008 + $0x31] sm:$0xff]
        %v1142 = vld [vmem:[%s1008 + $0x39] sm:$0xff]
        %v1143 = vld [vmem:[%s1008 + $0x49] sm:$0xff]
        %v1144 = vld [vmem:[%s1008 + $0x51] sm:$0xff]
        %v1145 = vld [vmem:[%s1008 + $0x61] sm:$0xff]
        %v1146 = vld [vmem:[%s1008 + $0x69] sm:$0xff]
        %v1147 = vld [vmem:[%s1008 + $0x79] sm:$0xff]
        %v1148 = vld [vmem:[%s1008 + $0x81] sm:$0xff]
        %v1149 = vld [vmem:[%s1008 + $0x91] sm:$0xff]
        %v1150 = vld [vmem:[%s1008 + $0x99] sm:$0xff]
        %v1151 = vld [vmem:[%s1008 + $0xa9] sm:$0xff]
        %v1152 = vld [vmem:[%s1008 + $0xb1] sm:$0xff]
        %v1153 = vld [vmem:[%s1008 + $0xc1] sm:$0xff]
        %v1154 = vld [vmem:[%s1008 + $0xc9] sm:$0xff]
        %v1155 = vld [vmem:[%s1008 + $0xd9] sm:$0xff]
        %v1156 = vld [vmem:[%s1008 + $0xe1] sm:$0xff]
        %v1157 = vld [vmem:[%s1008 + $0xf1] sm:$0xff]
        %v1158 = vld [vmem:[%s1008 + $0xf9] sm:$0xff]
        %v1159 = vld [vmem:[%s1008 + $0x109] sm:$0xff]
        %v1160 = vld [vmem:[%s1008 + $0x111] sm:$0xff]
        %v1161 = vld [vmem:[%s1008 + $0x121] sm:$0xff]
        %v1162 = vld [vmem:[%s1008 + $0x129] sm:$0xff]
        %v1163 = vld [vmem:[%s1008 + $0x139] sm:$0xff]
        %v1164 = vld [vmem:[%s1008 + $0x141] sm:$0xff]
        %v1165 = vld [vmem:[%s1008 + $0x151] sm:$0xff]
        %v1166 = vld [vmem:[%s1008 + $0x159] sm:$0xff]
        %v1167 = vld [vmem:[%s1008 + $0x169] sm:$0xff]
        %v1168 = vld [vmem:[%s1008 + $0x171] sm:$0xff]
        %v1169 = vpack.c.bf16 %v1138, %v1137
        %v1170 = vpack.c.bf16 %v1140, %v1139
        %v1171 = vpack.c.bf16 %v1142, %v1141
        %v1172 = vpack.c.bf16 %v1144, %v1143
        %v1173 = vpack.c.bf16 %v1146, %v1145
        %v1174 = vpack.c.bf16 %v1148, %v1147
        %v1175 = vpack.c.bf16 %v1150, %v1149
        %v1176 = vpack.c.bf16 %v1152, %v1151
        %v1177 = vpack.c.bf16 %v1154, %v1153
        %v1178 = vpack.c.bf16 %v1156, %v1155
        %v1179 = vpack.c.bf16 %v1158, %v1157
        %v1180 = vpack.c.bf16 %v1160, %v1159
        %v1181 = vpack.c.bf16 %v1162, %v1161
        %v1182 = vpack.c.bf16 %v1164, %v1163
        %v1183 = vpack.c.bf16 %v1166, %v1165
        %v1184 = vpack.c.bf16 %v1168, %v1167
        %1201 = vrot.lane.b32.xlu0 %v1169, 96
        %v1202 = vpop.permute.xlu0 %1201
        %1203 = vrot.lane.b32.xlu0 %v1170, 96
        %v1204 = vpop.permute.xlu0 %1203
        %1205 = vrot.lane.b32.xlu0 %v1171, 96
        %v1206 = vpop.permute.xlu0 %1205
        %1207 = vrot.lane.b32.xlu0 %v1172, 96
        %v1208 = vpop.permute.xlu0 %1207
        %1209 = vrot.lane.b32.xlu0 %v1173, 96
        %v1210 = vpop.permute.xlu0 %1209
        %1211 = vrot.lane.b32.xlu0 %v1174, 96
        %v1212 = vpop.permute.xlu0 %1211
        %1213 = vrot.lane.b32.xlu0 %v1175, 96
        %v1214 = vpop.permute.xlu0 %1213
        %1215 = vrot.lane.b32.xlu0 %v1176, 96
        %v1216 = vpop.permute.xlu0 %1215
        %1217 = vrot.lane.b32.xlu0 %v1177, 96
        %v1218 = vpop.permute.xlu0 %1217
        %1219 = vrot.lane.b32.xlu0 %v1178, 96
        %v1220 = vpop.permute.xlu0 %1219
        %1221 = vrot.lane.b32.xlu0 %v1179, 96
        %v1222 = vpop.permute.xlu0 %1221
        %1223 = vrot.lane.b32.xlu0 %v1180, 96
        %v1224 = vpop.permute.xlu0 %1223
        %1225 = vrot.lane.b32.xlu0 %v1181, 96
        %v1226 = vpop.permute.xlu0 %1225
        %1227 = vrot.lane.b32.xlu0 %v1182, 96
        %v1228 = vpop.permute.xlu0 %1227
        %1229 = vrot.lane.b32.xlu0 %v1183, 96
        %v1230 = vpop.permute.xlu0 %1229
        %1231 = vrot.lane.b32.xlu0 %v1184, 96
        %v1232 = vpop.permute.xlu0 %1231
        %1249 = vst.msk [vmem:[#allocation3 + $0x8] sm:$0xff] %vm799, %v1202
        %1250 = vst.msk [vmem:[#allocation3 + $0x20] sm:$0xff] %vm799, %v1204
        %1251 = vst.msk [vmem:[#allocation3 + $0x38] sm:$0xff] %vm799, %v1206
        %1252 = vst.msk [vmem:[#allocation3 + $0x50] sm:$0xff] %vm799, %v1208
        %1253 = vst.msk [vmem:[#allocation3 + $0x68] sm:$0xff] %vm799, %v1210
        %1254 = vst.msk [vmem:[#allocation3 + $0x80] sm:$0xff] %vm799, %v1212
        %1255 = vst.msk [vmem:[#allocation3 + $0x98] sm:$0xff] %vm799, %v1214
        %1256 = vst.msk [vmem:[#allocation3 + $0xb0] sm:$0xff] %vm799, %v1216
        %1257 = vst.msk [vmem:[#allocation3 + $0xc8] sm:$0xff] %vm799, %v1218
        %1258 = vst.msk [vmem:[#allocation3 + $0xe0] sm:$0xff] %vm799, %v1220
        %1259 = vst.msk [vmem:[#allocation3 + $0xf8] sm:$0xff] %vm799, %v1222
        %1260 = vst.msk [vmem:[#allocation3 + $0x110] sm:$0xff] %vm799, %v1224
        %1261 = vst.msk [vmem:[#allocation3 + $0x128] sm:$0xff] %vm799, %v1226
        %1262 = vst.msk [vmem:[#allocation3 + $0x140] sm:$0xff] %vm799, %v1228
        %1263 = vst.msk [vmem:[#allocation3 + $0x158] sm:$0xff] %vm799, %v1230
        %1264 = vst.msk [vmem:[#allocation3 + $0x170] sm:$0xff] %vm799, %v1232
        %v1265 = vld [vmem:[%s1008 + $0x2] sm:$0xff]
        %v1266 = vld [vmem:[%s1008 + $0xa] sm:$0xff]
        %v1267 = vld [vmem:[%s1008 + $0x1a] sm:$0xff]
        %v1268 = vld [vmem:[%s1008 + $0x22] sm:$0xff]
        %v1269 = vld [vmem:[%s1008 + $0x32] sm:$0xff]
        %v1270 = vld [vmem:[%s1008 + $0x3a] sm:$0xff]
        %v1271 = vld [vmem:[%s1008 + $0x4a] sm:$0xff]
        %v1272 = vld [vmem:[%s1008 + $0x52] sm:$0xff]
        %v1273 = vld [vmem:[%s1008 + $0x62] sm:$0xff]
        %v1274 = vld [vmem:[%s1008 + $0x6a] sm:$0xff]
        %v1275 = vld [vmem:[%s1008 + $0x7a] sm:$0xff]
        %v1276 = vld [vmem:[%s1008 + $0x82] sm:$0xff]
        %v1277 = vld [vmem:[%s1008 + $0x92] sm:$0xff]
        %v1278 = vld [vmem:[%s1008 + $0x9a] sm:$0xff]
        %v1279 = vld [vmem:[%s1008 + $0xaa] sm:$0xff]
        %v1280 = vld [vmem:[%s1008 + $0xb2] sm:$0xff]
        %v1281 = vld [vmem:[%s1008 + $0xc2] sm:$0xff]
        %v1282 = vld [vmem:[%s1008 + $0xca] sm:$0xff]
        %v1283 = vld [vmem:[%s1008 + $0xda] sm:$0xff]
        %v1284 = vld [vmem:[%s1008 + $0xe2] sm:$0xff]
        %v1285 = vld [vmem:[%s1008 + $0xf2] sm:$0xff]
        %v1286 = vld [vmem:[%s1008 + $0xfa] sm:$0xff]
        %v1287 = vld [vmem:[%s1008 + $0x10a] sm:$0xff]
        %v1288 = vld [vmem:[%s1008 + $0x112] sm:$0xff]
        %v1289 = vld [vmem:[%s1008 + $0x122] sm:$0xff]
        %v1290 = vld [vmem:[%s1008 + $0x12a] sm:$0xff]
        %v1291 = vld [vmem:[%s1008 + $0x13a] sm:$0xff]
        %v1292 = vld [vmem:[%s1008 + $0x142] sm:$0xff]
        %v1293 = vld [vmem:[%s1008 + $0x152] sm:$0xff]
        %v1294 = vld [vmem:[%s1008 + $0x15a] sm:$0xff]
        %v1295 = vld [vmem:[%s1008 + $0x16a] sm:$0xff]
        %v1296 = vld [vmem:[%s1008 + $0x172] sm:$0xff]
        %v1297 = vpack.c.bf16 %v1266, %v1265
        %v1298 = vpack.c.bf16 %v1268, %v1267
        %v1299 = vpack.c.bf16 %v1270, %v1269
        %v1300 = vpack.c.bf16 %v1272, %v1271
        %v1301 = vpack.c.bf16 %v1274, %v1273
        %v1302 = vpack.c.bf16 %v1276, %v1275
        %v1303 = vpack.c.bf16 %v1278, %v1277
        %v1304 = vpack.c.bf16 %v1280, %v1279
        %v1305 = vpack.c.bf16 %v1282, %v1281
        %v1306 = vpack.c.bf16 %v1284, %v1283
        %v1307 = vpack.c.bf16 %v1286, %v1285
        %v1308 = vpack.c.bf16 %v1288, %v1287
        %v1309 = vpack.c.bf16 %v1290, %v1289
        %v1310 = vpack.c.bf16 %v1292, %v1291
        %v1311 = vpack.c.bf16 %v1294, %v1293
        %v1312 = vpack.c.bf16 %v1296, %v1295
        %1313 = vst.msk [vmem:[#allocation3 + $0x10] sm:$0xff] %vm244, %v1297
        %1314 = vst.msk [vmem:[#allocation3 + $0x28] sm:$0xff] %vm244, %v1298
        %1315 = vst.msk [vmem:[#allocation3 + $0x40] sm:$0xff] %vm244, %v1299
        %1316 = vst.msk [vmem:[#allocation3 + $0x58] sm:$0xff] %vm244, %v1300
        %1317 = vst.msk [vmem:[#allocation3 + $0x70] sm:$0xff] %vm244, %v1301
        %1318 = vst.msk [vmem:[#allocation3 + $0x88] sm:$0xff] %vm244, %v1302
        %1319 = vst.msk [vmem:[#allocation3 + $0xa0] sm:$0xff] %vm244, %v1303
        %1320 = vst.msk [vmem:[#allocation3 + $0xb8] sm:$0xff] %vm244, %v1304
        %1321 = vst.msk [vmem:[#allocation3 + $0xd0] sm:$0xff] %vm244, %v1305
        %1322 = vst.msk [vmem:[#allocation3 + $0xe8] sm:$0xff] %vm244, %v1306
        %1323 = vst.msk [vmem:[#allocation3 + $0x100] sm:$0xff] %vm244, %v1307
        %1324 = vst.msk [vmem:[#allocation3 + $0x118] sm:$0xff] %vm244, %v1308
        %1325 = vst.msk [vmem:[#allocation3 + $0x130] sm:$0xff] %vm244, %v1309
        %1326 = vst.msk [vmem:[#allocation3 + $0x148] sm:$0xff] %vm244, %v1310
        %1327 = vst.msk [vmem:[#allocation3 + $0x160] sm:$0xff] %vm244, %v1311
        %1328 = vst.msk [vmem:[#allocation3 + $0x178] sm:$0xff] %vm244, %v1312
        %v1329 = vld [vmem:[#allocation3] sm:$0xff]
        %v1330 = vld [vmem:[#allocation3 + $0x8] sm:$0xff]
        %v1331 = vld [vmem:[#allocation3 + $0x10] sm:$0xff]
        %v1332 = vld [vmem:[#allocation3 + $0x18] sm:$0xff]
        %v1333 = vld [vmem:[#allocation3 + $0x20] sm:$0xff]
        %v1334 = vld [vmem:[#allocation3 + $0x28] sm:$0xff]
        %v1335 = vld [vmem:[#allocation3 + $0x30] sm:$0xff]
        %v1336 = vld [vmem:[#allocation3 + $0x38] sm:$0xff]
        %v1337 = vld [vmem:[#allocation3 + $0x40] sm:$0xff]
        %v1338 = vld [vmem:[#allocation3 + $0x48] sm:$0xff]
        %v1339 = vld [vmem:[#allocation3 + $0x50] sm:$0xff]
        %v1340 = vld [vmem:[#allocation3 + $0x58] sm:$0xff]
        %v1341 = vld [vmem:[#allocation3 + $0x60] sm:$0xff]
        %v1342 = vld [vmem:[#allocation3 + $0x68] sm:$0xff]
        %v1343 = vld [vmem:[#allocation3 + $0x70] sm:$0xff]
        %v1344 = vld [vmem:[#allocation3 + $0x78] sm:$0xff]
        %v1345 = vld [vmem:[#allocation3 + $0x80] sm:$0xff]
        %v1346 = vld [vmem:[#allocation3 + $0x88] sm:$0xff]
        %v1347 = vld [vmem:[#allocation3 + $0x90] sm:$0xff]
        %v1348 = vld [vmem:[#allocation3 + $0x98] sm:$0xff]
        %v1349 = vld [vmem:[#allocation3 + $0xa0] sm:$0xff]
        %v1350 = vld [vmem:[#allocation3 + $0xa8] sm:$0xff]
        %v1351 = vld [vmem:[#allocation3 + $0xb0] sm:$0xff]
        %v1352 = vld [vmem:[#allocation3 + $0xb8] sm:$0xff]
        %v1353 = vld [vmem:[#allocation3 + $0xc0] sm:$0xff]
        %v1354 = vld [vmem:[#allocation3 + $0xc8] sm:$0xff]
        %v1355 = vld [vmem:[#allocation3 + $0xd0] sm:$0xff]
        %v1356 = vld [vmem:[#allocation3 + $0xd8] sm:$0xff]
        %v1357 = vld [vmem:[#allocation3 + $0xe0] sm:$0xff]
        %v1358 = vld [vmem:[#allocation3 + $0xe8] sm:$0xff]
        %v1359 = vld [vmem:[#allocation3 + $0xf0] sm:$0xff]
        %v1360 = vld [vmem:[#allocation3 + $0xf8] sm:$0xff]
        %v1361 = vld [vmem:[#allocation3 + $0x100] sm:$0xff]
        %v1362 = vld [vmem:[#allocation3 + $0x108] sm:$0xff]
        %v1363 = vld [vmem:[#allocation3 + $0x110] sm:$0xff]
        %v1364 = vld [vmem:[#allocation3 + $0x118] sm:$0xff]
        %v1365 = vld [vmem:[#allocation3 + $0x120] sm:$0xff]
        %v1366 = vld [vmem:[#allocation3 + $0x128] sm:$0xff]
        %v1367 = vld [vmem:[#allocation3 + $0x130] sm:$0xff]
        %v1368 = vld [vmem:[#allocation3 + $0x138] sm:$0xff]
        %v1369 = vld [vmem:[#allocation3 + $0x140] sm:$0xff]
        %v1370 = vld [vmem:[#allocation3 + $0x148] sm:$0xff]
        %v1371 = vld [vmem:[#allocation3 + $0x150] sm:$0xff]
        %v1372 = vld [vmem:[#allocation3 + $0x158] sm:$0xff]
        %v1373 = vld [vmem:[#allocation3 + $0x160] sm:$0xff]
        %v1374 = vld [vmem:[#allocation3 + $0x168] sm:$0xff]
        %v1375 = vld [vmem:[#allocation3 + $0x170] sm:$0xff]
        %v1376 = vld [vmem:[#allocation3 + $0x178] sm:$0xff]
        %v1377 = vld [vmem:[%s2] sm:$0xf]
        %v1378 = vld [vmem:[%s2 + $0x4] sm:$0xf]
        %v1379 = vld [vmem:[%s2 + $0x8] sm:$0xf]
        %v1380 = vld [vmem:[%s2 + $0xc] sm:$0xf]
        %v1381 = vld [vmem:[%s2 + $0x10] sm:$0xf]
        %v1382 = vld [vmem:[%s2 + $0x14] sm:$0xf]
        %v1383 = vld [vmem:[%s2 + $0x18] sm:$0xf]
        %v1384 = vld [vmem:[%s2 + $0x1c] sm:$0xf]
        %v1385 = vld [vmem:[%s2 + $0x20] sm:$0xf]
        %v1386 = vld [vmem:[%s2 + $0x24] sm:$0xf]
        %v1387 = vld [vmem:[%s2 + $0x28] sm:$0xf]
        %v1388 = vld [vmem:[%s2 + $0x2c] sm:$0xf]
        %v1389 = vld [vmem:[%s2 + $0x30] sm:$0xf]
        %v1390 = vld [vmem:[%s2 + $0x34] sm:$0xf]
        %v1391 = vld [vmem:[%s2 + $0x38] sm:$0xf]
        %v1392 = vld [vmem:[%s2 + $0x3c] sm:$0xf]
        %v1393 = vld [vmem:[%s2 + $0x40] sm:$0xf]
        %v1394 = vld [vmem:[%s2 + $0x44] sm:$0xf]
        %v1395 = vld [vmem:[%s2 + $0x48] sm:$0xf]
        %v1396 = vld [vmem:[%s2 + $0x4c] sm:$0xf]
        %v1397 = vld [vmem:[%s2 + $0x50] sm:$0xf]
        %v1398 = vld [vmem:[%s2 + $0x54] sm:$0xf]
        %v1399 = vld [vmem:[%s2 + $0x58] sm:$0xf]
        %v1400 = vld [vmem:[%s2 + $0x5c] sm:$0xf]
        %v1401 = vld [vmem:[%s2 + $0x60] sm:$0xf]
        %v1402 = vld [vmem:[%s2 + $0x64] sm:$0xf]
        %v1403 = vld [vmem:[%s2 + $0x68] sm:$0xf]
        %v1404 = vld [vmem:[%s2 + $0x6c] sm:$0xf]
        %v1405 = vld [vmem:[%s2 + $0x70] sm:$0xf]
        %v1406 = vld [vmem:[%s2 + $0x74] sm:$0xf]
        %v1407 = vld [vmem:[%s2 + $0x78] sm:$0xf]
        %v1408 = vld [vmem:[%s2 + $0x7c] sm:$0xf]
        %v1409 = vld [vmem:[%s2 + $0x80] sm:$0xf]
        %v1410 = vld [vmem:[%s2 + $0x84] sm:$0xf]
        %v1411 = vld [vmem:[%s2 + $0x88] sm:$0xf]
        %v1412 = vld [vmem:[%s2 + $0x8c] sm:$0xf]
        %v1413 = vld [vmem:[%s3] sm:$0x1]
        %v1415 = vlaneseq
        %v1416 = vshrl.u32 %v1415, 7
        %v1417 = vsub.s32 0, %v1416
        %v1418 = vrot.slane %v1413, %v1417
        %v1456 = vunpack.c.l.b16 %v1377
        %v1457 = vunpack.c.l.b16 %v1378
        %v1458 = vunpack.c.l.b16 %v1379
        %v1459 = vunpack.c.l.b16 %v1380
        %v1460 = vunpack.c.l.b16 %v1381
        %v1461 = vunpack.c.l.b16 %v1382
        %v1462 = vunpack.c.l.b16 %v1383
        %v1463 = vunpack.c.l.b16 %v1384
        %v1464 = vunpack.c.l.b16 %v1385
        %v1465 = vunpack.c.l.b16 %v1386
        %v1466 = vunpack.c.l.b16 %v1387
        %v1467 = vunpack.c.l.b16 %v1388
        %v1468 = vunpack.c.l.b16 %v1389
        %v1469 = vunpack.c.l.b16 %v1390
        %v1470 = vunpack.c.l.b16 %v1391
        %v1471 = vunpack.c.l.b16 %v1392
        %v1472 = vunpack.c.l.b16 %v1393
        %v1473 = vunpack.c.l.b16 %v1394
        %v1474 = vunpack.c.l.b16 %v1395
        %v1475 = vunpack.c.l.b16 %v1396
        %v1476 = vunpack.c.l.b16 %v1397
        %v1477 = vunpack.c.l.b16 %v1398
        %v1478 = vunpack.c.l.b16 %v1399
        %v1479 = vunpack.c.l.b16 %v1400
        %v1480 = vunpack.c.l.b16 %v1401
        %v1481 = vunpack.c.l.b16 %v1402
        %v1482 = vunpack.c.l.b16 %v1403
        %v1483 = vunpack.c.l.b16 %v1404
        %v1484 = vunpack.c.l.b16 %v1405
        %v1485 = vunpack.c.l.b16 %v1406
        %v1486 = vunpack.c.l.b16 %v1407
        %v1487 = vunpack.c.l.b16 %v1408
        %v1488 = vunpack.c.l.b16 %v1409
        %v1489 = vunpack.c.l.b16 %v1410
        %v1490 = vunpack.c.l.b16 %v1411
        %v1491 = vunpack.c.l.b16 %v1412
        %v1492 = vpack.c.b16 %v1457, %v1456
        %v1493 = vpack.c.b16 %v1459, %v1458
        %v1494 = vpack.c.b16 %v1461, %v1460
        %v1495 = vpack.c.b16 %v1463, %v1462
        %v1496 = vpack.c.b16 %v1465, %v1464
        %v1497 = vpack.c.b16 %v1467, %v1466
        %v1498 = vpack.c.b16 %v1469, %v1468
        %v1499 = vpack.c.b16 %v1471, %v1470
        %v1500 = vpack.c.b16 %v1473, %v1472
        %v1501 = vpack.c.b16 %v1475, %v1474
        %v1502 = vpack.c.b16 %v1477, %v1476
        %v1503 = vpack.c.b16 %v1479, %v1478
        %v1504 = vpack.c.b16 %v1481, %v1480
        %v1505 = vpack.c.b16 %v1483, %v1482
        %v1506 = vpack.c.b16 %v1485, %v1484
        %v1507 = vpack.c.b16 %v1487, %v1486
        %v1508 = vpack.c.b16 %v1489, %v1488
        %v1509 = vpack.c.b16 %v1491, %v1490
        %v1529 = vsel %vm244, %v1331, 0
        %v1532 = vsel %vm244, %v1334, 0
        %v1535 = vsel %vm244, %v1337, 0
        %v1538 = vsel %vm244, %v1340, 0
        %v1541 = vsel %vm244, %v1343, 0
        %v1544 = vsel %vm244, %v1346, 0
        %v1547 = vsel %vm244, %v1349, 0
        %v1550 = vsel %vm244, %v1352, 0
        %v1553 = vsel %vm244, %v1355, 0
        %v1556 = vsel %vm244, %v1358, 0
        %v1559 = vsel %vm244, %v1361, 0
        %v1562 = vsel %vm244, %v1364, 0
        %v1565 = vsel %vm244, %v1367, 0
        %v1568 = vsel %vm244, %v1370, 0
        %v1571 = vsel %vm244, %v1373, 0
        %v1574 = vsel %vm244, %v1376, 0
        %1576 = vmatprep.subr.bf16.mxu0 0
        %1577 = vmatpush1.bf16.msra.mxu0 %v1492
        %1578 = vmatprep.subr.bf16.mxu0 0
        %1579 = vmatpush1.bf16.msra.mxu0 %v1493
        %1580 = vmatprep.subr.bf16.mxu0 0
        %1581 = vmatpush1.bf16.msra.mxu0 %v1494
        %1582 = vmatprep.subr.bf16.mxu0 0
        %1583 = vmatpush1.bf16.msra.mxu0 %v1495
        %1584 = vmatprep.subr.bf16.mxu0 0
        %1585 = vmatpush1.bf16.msra.mxu0 %v1496
        %1586 = vmatprep.subr.bf16.mxu0 0
        %1587 = vmatpush1.bf16.msra.mxu0 %v1497
        %1588 = vmatprep.subr.bf16.mxu0 0
        %1589 = vmatpush1.bf16.msra.mxu0 %v1498
        %1590 = vmatprep.subr.bf16.mxu0 0
        %1591 = vmatpush1.bf16.msra.mxu0 %v1499
        %1592 = vmatprep.subr.bf16.mxu0 0
        %1593 = vmatpush1.bf16.msra.mxu0 %v1500
        %1594 = vmatprep.subr.bf16.mxu0 0
        %1595 = vmatpush1.bf16.msra.mxu0 %v1501
        %1596 = vmatprep.subr.bf16.mxu0 0
        %1597 = vmatpush1.bf16.msra.mxu0 %v1502
        %1598 = vmatprep.subr.bf16.mxu0 0
        %1599 = vmatpush1.bf16.msra.mxu0 %v1503
        %1600 = vmatprep.subr.bf16.mxu0 0
        %1601 = vmatpush1.bf16.msra.mxu0 %v1504
        %1602 = vmatprep.subr.bf16.mxu0 0
        %1603 = vmatpush1.bf16.msra.mxu0 %v1505
        %1604 = vmatprep.subr.bf16.mxu0 0
        %1605 = vmatpush1.bf16.msra.mxu0 %v1506
        %1606 = vmatprep.subr.bf16.mxu0 0
        %1607 = vmatpush1.bf16.msra.mxu0 %v1507
        %1608 = vmatprep.mubr.bf16.mxu0 %v1330
        %1609 = vmatmul.mubr.bf16.gmra.mrb[0].mxu0 %v1329
        %v1610 = vpop.f32.mrb[0].mxu0
        %v1611 = vadd.f32 %v1418, %v1610
        %v1612 = vpop.f32.mrb[0].mxu0
        %v1613 = vpop.f32.mrb[0].mxu0
        %v1614 = vadd.f32 %v1418, %v1613
        %v1615 = vpop.f32.mrb[0].mxu0
        %1616 = vmatprep.mubr.bf16.mxu0 %v1333
        %1617 = vmatmul.mubr.bf16.gmra.mrb[0].mxu0 %v1332
        %v1618 = vpop.f32.mrb[0].mxu0
        %v1619 = vadd.f32 %v1418, %v1618
        %v1620 = vpop.f32.mrb[0].mxu0
        %v1621 = vpop.f32.mrb[0].mxu0
        %v1622 = vadd.f32 %v1418, %v1621
        %v1623 = vpop.f32.mrb[0].mxu0
        %1624 = vmatprep.mubr.bf16.mxu0 %v1336
        %1625 = vmatmul.mubr.bf16.gmra.mrb[0].mxu0 %v1335
        %v1626 = vpop.f32.mrb[0].mxu0
        %v1627 = vadd.f32 %v1418, %v1626
        %v1628 = vpop.f32.mrb[0].mxu0
        %v1629 = vpop.f32.mrb[0].mxu0
        %v1630 = vadd.f32 %v1418, %v1629
        %v1631 = vpop.f32.mrb[0].mxu0
        %1632 = vmatprep.mubr.bf16.mxu0 %v1339
        %1633 = vmatmul.mubr.bf16.gmra.mrb[0].mxu0 %v1338
        %v1634 = vpop.f32.mrb[0].mxu0
        %v1635 = vadd.f32 %v1418, %v1634
        %v1636 = vpop.f32.mrb[0].mxu0
        %v1637 = vpop.f32.mrb[0].mxu0
        %v1638 = vadd.f32 %v1418, %v1637
        %v1639 = vpop.f32.mrb[0].mxu0
        %1640 = vmatprep.mubr.bf16.mxu0 %v1342
        %1641 = vmatmul.mubr.bf16.gmra.mrb[0].mxu0 %v1341
        %v1642 = vpop.f32.mrb[0].mxu0
        %v1643 = vadd.f32 %v1418, %v1642
        %v1644 = vpop.f32.mrb[0].mxu0
        %v1645 = vpop.f32.mrb[0].mxu0
        %v1646 = vadd.f32 %v1418, %v1645
        %v1647 = vpop.f32.mrb[0].mxu0
        %1648 = vmatprep.mubr.bf16.mxu0 %v1345
        %1649 = vmatmul.mubr.bf16.gmra.mrb[0].mxu0 %v1344
        %v1650 = vpop.f32.mrb[0].mxu0
        %v1651 = vadd.f32 %v1418, %v1650
        %v1652 = vpop.f32.mrb[0].mxu0
        %v1653 = vpop.f32.mrb[0].mxu0
        %v1654 = vadd.f32 %v1418, %v1653
        %v1655 = vpop.f32.mrb[0].mxu0
        %1656 = vmatprep.mubr.bf16.mxu0 %v1348
        %1657 = vmatmul.mubr.bf16.gmra.mrb[0].mxu0 %v1347
        %v1658 = vpop.f32.mrb[0].mxu0
        %v1659 = vadd.f32 %v1418, %v1658
        %v1660 = vpop.f32.mrb[0].mxu0
        %v1661 = vpop.f32.mrb[0].mxu0
        %v1662 = vadd.f32 %v1418, %v1661
        %v1663 = vpop.f32.mrb[0].mxu0
        %1664 = vmatprep.mubr.bf16.mxu0 %v1351
        %1665 = vmatmul.mubr.bf16.gmra.mrb[0].mxu0 %v1350
        %v1666 = vpop.f32.mrb[0].mxu0
        %v1667 = vadd.f32 %v1418, %v1666
        %v1668 = vpop.f32.mrb[0].mxu0
        %v1669 = vpop.f32.mrb[0].mxu0
        %v1670 = vadd.f32 %v1418, %v1669
        %v1671 = vpop.f32.mrb[0].mxu0
        %1672 = vmatprep.mubr.bf16.mxu0 %v1354
        %1673 = vmatmul.mubr.bf16.gmra.mrb[0].mxu0 %v1353
        %v1674 = vpop.f32.mrb[0].mxu0
        %v1675 = vadd.f32 %v1418, %v1674
        %v1676 = vpop.f32.mrb[0].mxu0
        %v1677 = vpop.f32.mrb[0].mxu0
        %v1678 = vadd.f32 %v1418, %v1677
        %v1679 = vpop.f32.mrb[0].mxu0
        %1680 = vmatprep.mubr.bf16.mxu0 %v1357
        %1681 = vmatmul.mubr.bf16.gmra.mrb[0].mxu0 %v1356
        %v1682 = vpop.f32.mrb[0].mxu0
        %v1683 = vadd.f32 %v1418, %v1682
        %v1684 = vpop.f32.mrb[0].mxu0
        %v1685 = vpop.f32.mrb[0].mxu0
        %v1686 = vadd.f32 %v1418, %v1685
        %v1687 = vpop.f32.mrb[0].mxu0
        %1688 = vmatprep.mubr.bf16.mxu0 %v1360
        %1689 = vmatmul.mubr.bf16.gmra.mrb[0].mxu0 %v1359
        %v1690 = vpop.f32.mrb[0].mxu0
        %v1691 = vadd.f32 %v1418, %v1690
        %v1692 = vpop.f32.mrb[0].mxu0
        %v1693 = vpop.f32.mrb[0].mxu0
        %v1694 = vadd.f32 %v1418, %v1693
        %v1695 = vpop.f32.mrb[0].mxu0
        %1696 = vmatprep.mubr.bf16.mxu0 %v1363
        %1697 = vmatmul.mubr.bf16.gmra.mrb[0].mxu0 %v1362
        %v1698 = vpop.f32.mrb[0].mxu0
        %v1699 = vadd.f32 %v1418, %v1698
        %v1700 = vpop.f32.mrb[0].mxu0
        %v1701 = vpop.f32.mrb[0].mxu0
        %v1702 = vadd.f32 %v1418, %v1701
        %v1703 = vpop.f32.mrb[0].mxu0
        %1704 = vmatprep.mubr.bf16.mxu0 %v1366
        %1705 = vmatmul.mubr.bf16.gmra.mrb[0].mxu0 %v1365
        %v1706 = vpop.f32.mrb[0].mxu0
        %v1707 = vadd.f32 %v1418, %v1706
        %v1708 = vpop.f32.mrb[0].mxu0
        %v1709 = vpop.f32.mrb[0].mxu0
        %v1710 = vadd.f32 %v1418, %v1709
        %v1711 = vpop.f32.mrb[0].mxu0
        %1712 = vmatprep.mubr.bf16.mxu0 %v1369
        %1713 = vmatmul.mubr.bf16.gmra.mrb[0].mxu0 %v1368
        %v1714 = vpop.f32.mrb[0].mxu0
        %v1715 = vadd.f32 %v1418, %v1714
        %v1716 = vpop.f32.mrb[0].mxu0
        %v1717 = vpop.f32.mrb[0].mxu0
        %v1718 = vadd.f32 %v1418, %v1717
        %v1719 = vpop.f32.mrb[0].mxu0
        %1720 = vmatprep.mubr.bf16.mxu0 %v1372
        %1721 = vmatmul.mubr.bf16.gmra.mrb[0].mxu0 %v1371
        %v1722 = vpop.f32.mrb[0].mxu0
        %v1723 = vadd.f32 %v1418, %v1722
        %v1724 = vpop.f32.mrb[0].mxu0
        %v1725 = vpop.f32.mrb[0].mxu0
        %v1726 = vadd.f32 %v1418, %v1725
        %v1727 = vpop.f32.mrb[0].mxu0
        %1728 = vmatprep.mubr.bf16.mxu0 %v1375
        %1729 = vmatmul.mubr.bf16.gmra.mrb[0].mxu0 %v1374
        %v1730 = vpop.f32.mrb[0].mxu0
        %v1731 = vadd.f32 %v1418, %v1730
        %v1732 = vpop.f32.mrb[0].mxu0
        %v1733 = vpop.f32.mrb[0].mxu0
        %v1734 = vadd.f32 %v1418, %v1733
        %v1735 = vpop.f32.mrb[0].mxu0
        %1736 = vdwg.mxu0
        %1737 = vmatprep.subr.bf16.mxu0 0
        %1738 = vmatpush1.bf16.msra.mxu0 %v1508
        %1739 = vmatprep.subr.bf16.mxu0 0
        %1740 = vmatpush1.bf16.msra.mxu0 %v1509
        %1741 = vmatprep.subr.bf16.mxu0 0
        %1742 = vmatpush1.bf16.msra.mxu0 0
        %1743 = vmatprep.subr.bf16.mxu0 0
        %1744 = vmatpush1.bf16.msra.mxu0 0
        %1745 = vmatprep.subr.bf16.mxu0 0
        %1746 = vmatpush1.bf16.msra.mxu0 0
        %1747 = vmatprep.subr.bf16.mxu0 0
        %1748 = vmatpush1.bf16.msra.mxu0 0
        %1749 = vmatprep.subr.bf16.mxu0 0
        %1750 = vmatpush1.bf16.msra.mxu0 0
        %1751 = vmatprep.subr.bf16.mxu0 0
        %1752 = vmatpush1.bf16.msra.mxu0 0
        %1753 = vmatprep.subr.bf16.mxu0 0
        %1754 = vmatpush1.bf16.msra.mxu0 0
        %1755 = vmatprep.subr.bf16.mxu0 0
        %1756 = vmatpush1.bf16.msra.mxu0 0
        %1757 = vmatprep.subr.bf16.mxu0 0
        %1758 = vmatpush1.bf16.msra.mxu0 0
        %1759 = vmatprep.subr.bf16.mxu0 0
        %1760 = vmatpush1.bf16.msra.mxu0 0
        %1761 = vmatprep.subr.bf16.mxu0 0
        %1762 = vmatpush1.bf16.msra.mxu0 0
        %1763 = vmatprep.subr.bf16.mxu0 0
        %1764 = vmatpush1.bf16.msra.mxu0 0
        %1765 = vmatprep.subr.bf16.mxu0 0
        %1766 = vmatpush1.bf16.msra.mxu0 0
        %1767 = vmatprep.subr.bf16.mxu0 0
        %1768 = vmatpush1.bf16.msra.mxu0 0
        %1769 = vmatprep.mubr.bf16.mxu0 0
        %1770 = vmatmul.mubr.bf16.gmra.mrb[0].mxu0 %v1529
        %v1771 = vpop.f32.mrb[0].mxu0
        %v1772 = vadd.f32 %v1611, %v1771
        %v1773 = vpop.f32.mrb[0].mxu0
        %v1774 = vpop.f32.mrb[0].mxu0
        %v1775 = vadd.f32 %v1614, %v1774
        %v1776 = vpop.f32.mrb[0].mxu0
        %1777 = vmatprep.mubr.bf16.mxu0 0
        %1778 = vmatmul.mubr.bf16.gmra.mrb[0].mxu0 %v1532
        %v1779 = vpop.f32.mrb[0].mxu0
        %v1780 = vadd.f32 %v1619, %v1779
        %v1781 = vpop.f32.mrb[0].mxu0
        %v1782 = vpop.f32.mrb[0].mxu0
        %v1783 = vadd.f32 %v1622, %v1782
        %v1784 = vpop.f32.mrb[0].mxu0
        %1785 = vmatprep.mubr.bf16.mxu0 0
        %1786 = vmatmul.mubr.bf16.gmra.mrb[0].mxu0 %v1535
        %v1787 = vpop.f32.mrb[0].mxu0
        %v1788 = vadd.f32 %v1627, %v1787
        %v1789 = vpop.f32.mrb[0].mxu0
        %v1790 = vpop.f32.mrb[0].mxu0
        %v1791 = vadd.f32 %v1630, %v1790
        %v1792 = vpop.f32.mrb[0].mxu0
        %1793 = vmatprep.mubr.bf16.mxu0 0
        %1794 = vmatmul.mubr.bf16.gmra.mrb[0].mxu0 %v1538
        %v1795 = vpop.f32.mrb[0].mxu0
        %v1796 = vadd.f32 %v1635, %v1795
        %v1797 = vpop.f32.mrb[0].mxu0
        %v1798 = vpop.f32.mrb[0].mxu0
        %v1799 = vadd.f32 %v1638, %v1798
        %v1800 = vpop.f32.mrb[0].mxu0
        %1801 = vmatprep.mubr.bf16.mxu0 0
        %1802 = vmatmul.mubr.bf16.gmra.mrb[0].mxu0 %v1541
        %v1803 = vpop.f32.mrb[0].mxu0
        %v1804 = vadd.f32 %v1643, %v1803
        %v1805 = vpop.f32.mrb[0].mxu0
        %v1806 = vpop.f32.mrb[0].mxu0
        %v1807 = vadd.f32 %v1646, %v1806
        %v1808 = vpop.f32.mrb[0].mxu0
        %1809 = vmatprep.mubr.bf16.mxu0 0
        %1810 = vmatmul.mubr.bf16.gmra.mrb[0].mxu0 %v1544
        %v1811 = vpop.f32.mrb[0].mxu0
        %v1812 = vadd.f32 %v1651, %v1811
        %v1813 = vpop.f32.mrb[0].mxu0
        %v1814 = vpop.f32.mrb[0].mxu0
        %v1815 = vadd.f32 %v1654, %v1814
        %v1816 = vpop.f32.mrb[0].mxu0
        %1817 = vmatprep.mubr.bf16.mxu0 0
        %1818 = vmatmul.mubr.bf16.gmra.mrb[0].mxu0 %v1547
        %v1819 = vpop.f32.mrb[0].mxu0
        %v1820 = vadd.f32 %v1659, %v1819
        %v1821 = vpop.f32.mrb[0].mxu0
        %v1822 = vpop.f32.mrb[0].mxu0
        %v1823 = vadd.f32 %v1662, %v1822
        %v1824 = vpop.f32.mrb[0].mxu0
        %1825 = vmatprep.mubr.bf16.mxu0 0
        %1826 = vmatmul.mubr.bf16.gmra.mrb[0].mxu0 %v1550
        %v1827 = vpop.f32.mrb[0].mxu0
        %v1828 = vadd.f32 %v1667, %v1827
        %v1829 = vpop.f32.mrb[0].mxu0
        %v1830 = vpop.f32.mrb[0].mxu0
        %v1831 = vadd.f32 %v1670, %v1830
        %v1832 = vpop.f32.mrb[0].mxu0
        %1833 = vmatprep.mubr.bf16.mxu0 0
        %1834 = vmatmul.mubr.bf16.gmra.mrb[0].mxu0 %v1553
        %v1835 = vpop.f32.mrb[0].mxu0
        %v1836 = vadd.f32 %v1675, %v1835
        %v1837 = vpop.f32.mrb[0].mxu0
        %v1838 = vpop.f32.mrb[0].mxu0
        %v1839 = vadd.f32 %v1678, %v1838
        %v1840 = vpop.f32.mrb[0].mxu0
        %1841 = vmatprep.mubr.bf16.mxu0 0
        %1842 = vmatmul.mubr.bf16.gmra.mrb[0].mxu0 %v1556
        %v1843 = vpop.f32.mrb[0].mxu0
        %v1844 = vadd.f32 %v1683, %v1843
        %v1845 = vpop.f32.mrb[0].mxu0
        %v1846 = vpop.f32.mrb[0].mxu0
        %v1847 = vadd.f32 %v1686, %v1846
        %v1848 = vpop.f32.mrb[0].mxu0
        %1849 = vmatprep.mubr.bf16.mxu0 0
        %1850 = vmatmul.mubr.bf16.gmra.mrb[0].mxu0 %v1559
        %v1851 = vpop.f32.mrb[0].mxu0
        %v1852 = vadd.f32 %v1691, %v1851
        %v1853 = vpop.f32.mrb[0].mxu0
        %v1854 = vpop.f32.mrb[0].mxu0
        %v1855 = vadd.f32 %v1694, %v1854
        %v1856 = vpop.f32.mrb[0].mxu0
        %1857 = vmatprep.mubr.bf16.mxu0 0
        %1858 = vmatmul.mubr.bf16.gmra.mrb[0].mxu0 %v1562
        %v1859 = vpop.f32.mrb[0].mxu0
        %v1860 = vadd.f32 %v1699, %v1859
        %v1861 = vpop.f32.mrb[0].mxu0
        %v1862 = vpop.f32.mrb[0].mxu0
        %v1863 = vadd.f32 %v1702, %v1862
        %v1864 = vpop.f32.mrb[0].mxu0
        %1865 = vmatprep.mubr.bf16.mxu0 0
        %1866 = vmatmul.mubr.bf16.gmra.mrb[0].mxu0 %v1565
        %v1867 = vpop.f32.mrb[0].mxu0
        %v1868 = vadd.f32 %v1707, %v1867
        %v1869 = vpop.f32.mrb[0].mxu0
        %v1870 = vpop.f32.mrb[0].mxu0
        %v1871 = vadd.f32 %v1710, %v1870
        %v1872 = vpop.f32.mrb[0].mxu0
        %1873 = vmatprep.mubr.bf16.mxu0 0
        %1874 = vmatmul.mubr.bf16.gmra.mrb[0].mxu0 %v1568
        %v1875 = vpop.f32.mrb[0].mxu0
        %v1876 = vadd.f32 %v1715, %v1875
        %v1877 = vpop.f32.mrb[0].mxu0
        %v1878 = vpop.f32.mrb[0].mxu0
        %v1879 = vadd.f32 %v1718, %v1878
        %v1880 = vpop.f32.mrb[0].mxu0
        %1881 = vmatprep.mubr.bf16.mxu0 0
        %1882 = vmatmul.mubr.bf16.gmra.mrb[0].mxu0 %v1571
        %v1883 = vpop.f32.mrb[0].mxu0
        %v1884 = vadd.f32 %v1723, %v1883
        %v1885 = vpop.f32.mrb[0].mxu0
        %v1886 = vpop.f32.mrb[0].mxu0
        %v1887 = vadd.f32 %v1726, %v1886
        %v1888 = vpop.f32.mrb[0].mxu0
        %1889 = vmatprep.mubr.bf16.mxu0 0
        %1890 = vmatmul.mubr.bf16.gmra.mrb[0].mxu0 %v1574
        %v1891 = vpop.f32.mrb[0].mxu0
        %v1892 = vadd.f32 %v1731, %v1891
        %v1893 = vpop.f32.mrb[0].mxu0
        %v1894 = vpop.f32.mrb[0].mxu0
        %v1895 = vadd.f32 %v1734, %v1894
        %v1896 = vpop.f32.mrb[0].mxu0
        %1897 = vdwg.mxu0
        %v1898 = vmax.f32 %v1772, 0.0
        %v1899 = vmax.f32 %v1775, 0.0
        %v1900 = vmax.f32 %v1780, 0.0
        %v1901 = vmax.f32 %v1783, 0.0
        %v1902 = vmax.f32 %v1788, 0.0
        %v1903 = vmax.f32 %v1791, 0.0
        %v1904 = vmax.f32 %v1796, 0.0
        %v1905 = vmax.f32 %v1799, 0.0
        %v1906 = vmax.f32 %v1804, 0.0
        %v1907 = vmax.f32 %v1807, 0.0
        %v1908 = vmax.f32 %v1812, 0.0
        %v1909 = vmax.f32 %v1815, 0.0
        %v1910 = vmax.f32 %v1820, 0.0
        %v1911 = vmax.f32 %v1823, 0.0
        %v1912 = vmax.f32 %v1828, 0.0
        %v1913 = vmax.f32 %v1831, 0.0
        %v1914 = vmax.f32 %v1836, 0.0
        %v1915 = vmax.f32 %v1839, 0.0
        %v1916 = vmax.f32 %v1844, 0.0
        %v1917 = vmax.f32 %v1847, 0.0
        %v1918 = vmax.f32 %v1852, 0.0
        %v1919 = vmax.f32 %v1855, 0.0
        %v1920 = vmax.f32 %v1860, 0.0
        %v1921 = vmax.f32 %v1863, 0.0
        %v1922 = vmax.f32 %v1868, 0.0
        %v1923 = vmax.f32 %v1871, 0.0
        %v1924 = vmax.f32 %v1876, 0.0
        %v1925 = vmax.f32 %v1879, 0.0
        %v1926 = vmax.f32 %v1884, 0.0
        %v1927 = vmax.f32 %v1887, 0.0
        %v1928 = vmax.f32 %v1892, 0.0
        %v1929 = vmax.f32 %v1895, 0.0
        %v1930 = vld [vmem:[%s242] sm:$0xff]
        %v1931 = vld [vmem:[%s242 + $0x8] sm:$0xff]
        %v1932 = vld [vmem:[%s242 + $0x10] sm:$0xff]
        %v1933 = vld [vmem:[%s242 + $0x18] sm:$0xff]
        %v1934 = vld [vmem:[%s242 + $0x20] sm:$0xff]
        %v1935 = vld [vmem:[%s242 + $0x28] sm:$0xff]
        %v1936 = vld [vmem:[%s242 + $0x30] sm:$0xff]
        %v1937 = vld [vmem:[%s242 + $0x38] sm:$0xff]
        %v1938 = vld [vmem:[%s242 + $0x40] sm:$0xff]
        %v1939 = vld [vmem:[%s242 + $0x48] sm:$0xff]
        %v1940 = vld [vmem:[%s242 + $0x50] sm:$0xff]
        %v1941 = vld [vmem:[%s242 + $0x58] sm:$0xff]
        %v1942 = vld [vmem:[%s242 + $0x60] sm:$0xff]
        %v1943 = vld [vmem:[%s242 + $0x68] sm:$0xff]
        %v1944 = vld [vmem:[%s242 + $0x70] sm:$0xff]
        %v1945 = vld [vmem:[%s242 + $0x78] sm:$0xff]
        %v1946 = vld [vmem:[%s242 + $0x80] sm:$0xff]
        %v1947 = vld [vmem:[%s242 + $0x88] sm:$0xff]
        %v1948 = vld [vmem:[%s242 + $0x90] sm:$0xff]
        %v1949 = vld [vmem:[%s242 + $0x98] sm:$0xff]
        %v1950 = vld [vmem:[%s242 + $0xa0] sm:$0xff]
        %v1951 = vld [vmem:[%s242 + $0xa8] sm:$0xff]
        %v1952 = vld [vmem:[%s242 + $0xb0] sm:$0xff]
        %v1953 = vld [vmem:[%s242 + $0xb8] sm:$0xff]
        %v1954 = vld [vmem:[%s242 + $0xc0] sm:$0xff]
        %v1955 = vld [vmem:[%s242 + $0xc8] sm:$0xff]
        %v1956 = vld [vmem:[%s242 + $0xd0] sm:$0xff]
        %v1957 = vld [vmem:[%s242 + $0xd8] sm:$0xff]
        %v1958 = vld [vmem:[%s242 + $0xe0] sm:$0xff]
        %v1959 = vld [vmem:[%s242 + $0xe8] sm:$0xff]
        %v1960 = vld [vmem:[%s242 + $0xf0] sm:$0xff]
        %v1961 = vld [vmem:[%s242 + $0xf8] sm:$0xff]
        %1963 = vset.pattern.permute.xlu0 0
        %1964 = vperm.xlu0 %1963, %v1930
        %v1965 = vpop.permute.xlu0 %1964
        %1968 = vset.pattern.permute.xlu0 0
        %1969 = vperm.xlu0 %1968, %v1931
        %v1970 = vpop.permute.xlu0 %1969
        %1973 = vset.pattern.permute.xlu0 0
        %1974 = vperm.xlu0 %1973, %v1932
        %v1975 = vpop.permute.xlu0 %1974
        %1978 = vset.pattern.permute.xlu0 0
        %1979 = vperm.xlu0 %1978, %v1933
        %v1980 = vpop.permute.xlu0 %1979
        %1983 = vset.pattern.permute.xlu0 0
        %1984 = vperm.xlu0 %1983, %v1934
        %v1985 = vpop.permute.xlu0 %1984
        %1988 = vset.pattern.permute.xlu0 0
        %1989 = vperm.xlu0 %1988, %v1935
        %v1990 = vpop.permute.xlu0 %1989
        %1993 = vset.pattern.permute.xlu0 0
        %1994 = vperm.xlu0 %1993, %v1936
        %v1995 = vpop.permute.xlu0 %1994
        %1998 = vset.pattern.permute.xlu0 0
        %1999 = vperm.xlu0 %1998, %v1937
        %v2000 = vpop.permute.xlu0 %1999
        %2003 = vset.pattern.permute.xlu0 0
        %2004 = vperm.xlu0 %2003, %v1938
        %v2005 = vpop.permute.xlu0 %2004
        %2008 = vset.pattern.permute.xlu0 0
        %2009 = vperm.xlu0 %2008, %v1939
        %v2010 = vpop.permute.xlu0 %2009
        %2013 = vset.pattern.permute.xlu0 0
        %2014 = vperm.xlu0 %2013, %v1940
        %v2015 = vpop.permute.xlu0 %2014
        %2018 = vset.pattern.permute.xlu0 0
        %2019 = vperm.xlu0 %2018, %v1941
        %v2020 = vpop.permute.xlu0 %2019
        %2023 = vset.pattern.permute.xlu0 0
        %2024 = vperm.xlu0 %2023, %v1942
        %v2025 = vpop.permute.xlu0 %2024
        %2028 = vset.pattern.permute.xlu0 0
        %2029 = vperm.xlu0 %2028, %v1943
        %v2030 = vpop.permute.xlu0 %2029
        %2033 = vset.pattern.permute.xlu0 0
        %2034 = vperm.xlu0 %2033, %v1944
        %v2035 = vpop.permute.xlu0 %2034
        %2038 = vset.pattern.permute.xlu0 0
        %2039 = vperm.xlu0 %2038, %v1945
        %v2040 = vpop.permute.xlu0 %2039
        %2043 = vset.pattern.permute.xlu0 0
        %2044 = vperm.xlu0 %2043, %v1946
        %v2045 = vpop.permute.xlu0 %2044
        %2048 = vset.pattern.permute.xlu0 0
        %2049 = vperm.xlu0 %2048, %v1947
        %v2050 = vpop.permute.xlu0 %2049
        %2053 = vset.pattern.permute.xlu0 0
        %2054 = vperm.xlu0 %2053, %v1948
        %v2055 = vpop.permute.xlu0 %2054
        %2058 = vset.pattern.permute.xlu0 0
        %2059 = vperm.xlu0 %2058, %v1949
        %v2060 = vpop.permute.xlu0 %2059
        %2063 = vset.pattern.permute.xlu0 0
        %2064 = vperm.xlu0 %2063, %v1950
        %v2065 = vpop.permute.xlu0 %2064
        %2068 = vset.pattern.permute.xlu0 0
        %2069 = vperm.xlu0 %2068, %v1951
        %v2070 = vpop.permute.xlu0 %2069
        %2073 = vset.pattern.permute.xlu0 0
        %2074 = vperm.xlu0 %2073, %v1952
        %v2075 = vpop.permute.xlu0 %2074
        %2078 = vset.pattern.permute.xlu0 0
        %2079 = vperm.xlu0 %2078, %v1953
        %v2080 = vpop.permute.xlu0 %2079
        %2083 = vset.pattern.permute.xlu0 0
        %2084 = vperm.xlu0 %2083, %v1954
        %v2085 = vpop.permute.xlu0 %2084
        %2088 = vset.pattern.permute.xlu0 0
        %2089 = vperm.xlu0 %2088, %v1955
        %v2090 = vpop.permute.xlu0 %2089
        %2093 = vset.pattern.permute.xlu0 0
        %2094 = vperm.xlu0 %2093, %v1956
        %v2095 = vpop.permute.xlu0 %2094
        %2098 = vset.pattern.permute.xlu0 0
        %2099 = vperm.xlu0 %2098, %v1957
        %v2100 = vpop.permute.xlu0 %2099
        %2103 = vset.pattern.permute.xlu0 0
        %2104 = vperm.xlu0 %2103, %v1958
        %v2105 = vpop.permute.xlu0 %2104
        %2108 = vset.pattern.permute.xlu0 0
        %2109 = vperm.xlu0 %2108, %v1959
        %v2110 = vpop.permute.xlu0 %2109
        %2113 = vset.pattern.permute.xlu0 0
        %2114 = vperm.xlu0 %2113, %v1960
        %v2115 = vpop.permute.xlu0 %2114
        %2118 = vset.pattern.permute.xlu0 0
        %2119 = vperm.xlu0 %2118, %v1961
        %v2120 = vpop.permute.xlu0 %2119
        %v2122 = vmul.f32 %v1898, %v1965
        %v2123 = vmul.f32 %v1899, %v1970
        %v2124 = vmul.f32 %v1900, %v1975
        %v2125 = vmul.f32 %v1901, %v1980
        %v2126 = vmul.f32 %v1902, %v1985
        %v2127 = vmul.f32 %v1903, %v1990
        %v2128 = vmul.f32 %v1904, %v1995
        %v2129 = vmul.f32 %v1905, %v2000
        %v2130 = vmul.f32 %v1906, %v2005
        %v2131 = vmul.f32 %v1907, %v2010
        %v2132 = vmul.f32 %v1908, %v2015
        %v2133 = vmul.f32 %v1909, %v2020
        %v2134 = vmul.f32 %v1910, %v2025
        %v2135 = vmul.f32 %v1911, %v2030
        %v2136 = vmul.f32 %v1912, %v2035
        %v2137 = vmul.f32 %v1913, %v2040
        %v2138 = vmul.f32 %v1914, %v2045
        %v2139 = vmul.f32 %v1915, %v2050
        %v2140 = vmul.f32 %v1916, %v2055
        %v2141 = vmul.f32 %v1917, %v2060
        %v2142 = vmul.f32 %v1918, %v2065
        %v2143 = vmul.f32 %v1919, %v2070
        %v2144 = vmul.f32 %v1920, %v2075
        %v2145 = vmul.f32 %v1921, %v2080
        %v2146 = vmul.f32 %v1922, %v2085
        %v2147 = vmul.f32 %v1923, %v2090
        %v2148 = vmul.f32 %v1924, %v2095
        %v2149 = vmul.f32 %v1925, %v2100
        %v2150 = vmul.f32 %v1926, %v2105
        %v2151 = vmul.f32 %v1927, %v2110
        %v2152 = vmul.f32 %v1928, %v2115
        %v2153 = vmul.f32 %v1929, %v2120
        %v2154 = vpack.c.bf16 %v2123, %v2122
        %v2155 = vpack.c.bf16 %v2125, %v2124
        %v2156 = vpack.c.bf16 %v2127, %v2126
        %v2157 = vpack.c.bf16 %v2129, %v2128
        %v2158 = vpack.c.bf16 %v2131, %v2130
        %v2159 = vpack.c.bf16 %v2133, %v2132
        %v2160 = vpack.c.bf16 %v2135, %v2134
        %v2161 = vpack.c.bf16 %v2137, %v2136
        %v2162 = vpack.c.bf16 %v2139, %v2138
        %v2163 = vpack.c.bf16 %v2141, %v2140
        %v2164 = vpack.c.bf16 %v2143, %v2142
        %v2165 = vpack.c.bf16 %v2145, %v2144
        %v2166 = vpack.c.bf16 %v2147, %v2146
        %v2167 = vpack.c.bf16 %v2149, %v2148
        %v2168 = vpack.c.bf16 %v2151, %v2150
        %v2169 = vpack.c.bf16 %v2153, %v2152
        %v2170 = vld [vmem:[%s4] sm:$0xf]
        %v2171 = vld [vmem:[%s4 + $0x4] sm:$0xf]
        %v2172 = vld [vmem:[%s4 + $0x8] sm:$0xf]
        %v2173 = vld [vmem:[%s4 + $0xc] sm:$0xf]
        %v2178 = vunpack.c.l.b16 %v2170
        %v2179 = vunpack.c.l.b16 %v2171
        %v2180 = vunpack.c.l.b16 %v2172
        %v2181 = vunpack.c.l.b16 %v2173
        %v2182 = vpack.c.b16 %v2179, %v2178
        %v2183 = vpack.c.b16 %v2181, %v2180
        %v2187 = vsel %vm244, %v2154, 0
        %v2190 = vsel %vm244, %v2155, 0
        %v2193 = vsel %vm244, %v2156, 0
        %v2196 = vsel %vm244, %v2157, 0
        %v2199 = vsel %vm244, %v2158, 0
        %v2202 = vsel %vm244, %v2159, 0
        %v2205 = vsel %vm244, %v2160, 0
        %v2208 = vsel %vm244, %v2161, 0
        %v2211 = vsel %vm244, %v2162, 0
        %v2214 = vsel %vm244, %v2163, 0
        %v2217 = vsel %vm244, %v2164, 0
        %v2220 = vsel %vm244, %v2165, 0
        %v2223 = vsel %vm244, %v2166, 0
        %v2226 = vsel %vm244, %v2167, 0
        %v2229 = vsel %vm244, %v2168, 0
        %v2232 = vsel %vm244, %v2169, 0
        %2234 = vmatprep.subr.bf16.mxu0 0
        %2235 = vmatpush1.bf16.msra.mxu0 %v2182
        %2236 = vmatprep.subr.bf16.mxu0 0
        %2237 = vmatpush1.bf16.msra.mxu0 %v2183
        %2238 = vmatprep.subr.bf16.mxu0 0
        %2239 = vmatpush1.bf16.msra.mxu0 0
        %2240 = vmatprep.subr.bf16.mxu0 0
        %2241 = vmatpush1.bf16.msra.mxu0 0
        %2242 = vmatprep.subr.bf16.mxu0 0
        %2243 = vmatpush1.bf16.msra.mxu0 0
        %2244 = vmatprep.subr.bf16.mxu0 0
        %2245 = vmatpush1.bf16.msra.mxu0 0
        %2246 = vmatprep.subr.bf16.mxu0 0
        %2247 = vmatpush1.bf16.msra.mxu0 0
        %2248 = vmatprep.subr.bf16.mxu0 0
        %2249 = vmatpush1.bf16.msra.mxu0 0
        %2250 = vmatprep.subr.bf16.mxu0 0
        %2251 = vmatpush1.bf16.msra.mxu0 0
        %2252 = vmatprep.subr.bf16.mxu0 0
        %2253 = vmatpush1.bf16.msra.mxu0 0
        %2254 = vmatprep.subr.bf16.mxu0 0
        %2255 = vmatpush1.bf16.msra.mxu0 0
        %2256 = vmatprep.subr.bf16.mxu0 0
        %2257 = vmatpush1.bf16.msra.mxu0 0
        %2258 = vmatprep.subr.bf16.mxu0 0
        %2259 = vmatpush1.bf16.msra.mxu0 0
        %2260 = vmatprep.subr.bf16.mxu0 0
        %2261 = vmatpush1.bf16.msra.mxu0 0
        %2262 = vmatprep.subr.bf16.mxu0 0
        %2263 = vmatpush1.bf16.msra.mxu0 0
        %2264 = vmatprep.subr.bf16.mxu0 0
        %2265 = vmatpush1.bf16.msra.mxu0 0
        %2266 = vmatprep.mubr.bf16.mxu0 0
        %2267 = vmatmul.mubr.bf16.gmra.mrb[0].mxu0 %v2187
        %v2268 = vpop.f32.mrb[0].mxu0
        %v2269 = vadd.f32 0.0, %v2268
        %v2270 = vpop.f32.mrb[0].mxu0
        %v2271 = vpop.f32.mrb[0].mxu0
        %v2272 = vadd.f32 0.0, %v2271
        %v2273 = vpop.f32.mrb[0].mxu0
        %2274 = vmatprep.mubr.bf16.mxu0 0
        %2275 = vmatmul.mubr.bf16.gmra.mrb[0].mxu0 %v2190
        %v2276 = vpop.f32.mrb[0].mxu0
        %v2277 = vadd.f32 0.0, %v2276
        %v2278 = vpop.f32.mrb[0].mxu0
        %v2279 = vpop.f32.mrb[0].mxu0
        %v2280 = vadd.f32 0.0, %v2279
        %v2281 = vpop.f32.mrb[0].mxu0
        %2282 = vmatprep.mubr.bf16.mxu0 0
        %2283 = vmatmul.mubr.bf16.gmra.mrb[0].mxu0 %v2193
        %v2284 = vpop.f32.mrb[0].mxu0
        %v2285 = vadd.f32 0.0, %v2284
        %v2286 = vpop.f32.mrb[0].mxu0
        %v2287 = vpop.f32.mrb[0].mxu0
        %v2288 = vadd.f32 0.0, %v2287
        %v2289 = vpop.f32.mrb[0].mxu0
        %2290 = vmatprep.mubr.bf16.mxu0 0
        %2291 = vmatmul.mubr.bf16.gmra.mrb[0].mxu0 %v2196
        %v2292 = vpop.f32.mrb[0].mxu0
        %v2293 = vadd.f32 0.0, %v2292
        %v2294 = vpop.f32.mrb[0].mxu0
        %v2295 = vpop.f32.mrb[0].mxu0
        %v2296 = vadd.f32 0.0, %v2295
        %v2297 = vpop.f32.mrb[0].mxu0
        %2298 = vmatprep.mubr.bf16.mxu0 0
        %2299 = vmatmul.mubr.bf16.gmra.mrb[0].mxu0 %v2199
        %v2300 = vpop.f32.mrb[0].mxu0
        %v2301 = vadd.f32 0.0, %v2300
        %v2302 = vpop.f32.mrb[0].mxu0
        %v2303 = vpop.f32.mrb[0].mxu0
        %v2304 = vadd.f32 0.0, %v2303
        %v2305 = vpop.f32.mrb[0].mxu0
        %2306 = vmatprep.mubr.bf16.mxu0 0
        %2307 = vmatmul.mubr.bf16.gmra.mrb[0].mxu0 %v2202
        %v2308 = vpop.f32.mrb[0].mxu0
        %v2309 = vadd.f32 0.0, %v2308
        %v2310 = vpop.f32.mrb[0].mxu0
        %v2311 = vpop.f32.mrb[0].mxu0
        %v2312 = vadd.f32 0.0, %v2311
        %v2313 = vpop.f32.mrb[0].mxu0
        %2314 = vmatprep.mubr.bf16.mxu0 0
        %2315 = vmatmul.mubr.bf16.gmra.mrb[0].mxu0 %v2205
        %v2316 = vpop.f32.mrb[0].mxu0
        %v2317 = vadd.f32 0.0, %v2316
        %v2318 = vpop.f32.mrb[0].mxu0
        %v2319 = vpop.f32.mrb[0].mxu0
        %v2320 = vadd.f32 0.0, %v2319
        %v2321 = vpop.f32.mrb[0].mxu0
        %2322 = vmatprep.mubr.bf16.mxu0 0
        %2323 = vmatmul.mubr.bf16.gmra.mrb[0].mxu0 %v2208
        %v2324 = vpop.f32.mrb[0].mxu0
        %v2325 = vadd.f32 0.0, %v2324
        %v2326 = vpop.f32.mrb[0].mxu0
        %v2327 = vpop.f32.mrb[0].mxu0
        %v2328 = vadd.f32 0.0, %v2327
        %v2329 = vpop.f32.mrb[0].mxu0
        %2330 = vmatprep.mubr.bf16.mxu0 0
        %2331 = vmatmul.mubr.bf16.gmra.mrb[0].mxu0 %v2211
        %v2332 = vpop.f32.mrb[0].mxu0
        %v2333 = vadd.f32 0.0, %v2332
        %v2334 = vpop.f32.mrb[0].mxu0
        %v2335 = vpop.f32.mrb[0].mxu0
        %v2336 = vadd.f32 0.0, %v2335
        %v2337 = vpop.f32.mrb[0].mxu0
        %2338 = vmatprep.mubr.bf16.mxu0 0
        %2339 = vmatmul.mubr.bf16.gmra.mrb[0].mxu0 %v2214
        %v2340 = vpop.f32.mrb[0].mxu0
        %v2341 = vadd.f32 0.0, %v2340
        %v2342 = vpop.f32.mrb[0].mxu0
        %v2343 = vpop.f32.mrb[0].mxu0
        %v2344 = vadd.f32 0.0, %v2343
        %v2345 = vpop.f32.mrb[0].mxu0
        %2346 = vmatprep.mubr.bf16.mxu0 0
        %2347 = vmatmul.mubr.bf16.gmra.mrb[0].mxu0 %v2217
        %v2348 = vpop.f32.mrb[0].mxu0
        %v2349 = vadd.f32 0.0, %v2348
        %v2350 = vpop.f32.mrb[0].mxu0
        %v2351 = vpop.f32.mrb[0].mxu0
        %v2352 = vadd.f32 0.0, %v2351
        %v2353 = vpop.f32.mrb[0].mxu0
        %2354 = vmatprep.mubr.bf16.mxu0 0
        %2355 = vmatmul.mubr.bf16.gmra.mrb[0].mxu0 %v2220
        %v2356 = vpop.f32.mrb[0].mxu0
        %v2357 = vadd.f32 0.0, %v2356
        %v2358 = vpop.f32.mrb[0].mxu0
        %v2359 = vpop.f32.mrb[0].mxu0
        %v2360 = vadd.f32 0.0, %v2359
        %v2361 = vpop.f32.mrb[0].mxu0
        %2362 = vmatprep.mubr.bf16.mxu0 0
        %2363 = vmatmul.mubr.bf16.gmra.mrb[0].mxu0 %v2223
        %v2364 = vpop.f32.mrb[0].mxu0
        %v2365 = vadd.f32 0.0, %v2364
        %v2366 = vpop.f32.mrb[0].mxu0
        %v2367 = vpop.f32.mrb[0].mxu0
        %v2368 = vadd.f32 0.0, %v2367
        %v2369 = vpop.f32.mrb[0].mxu0
        %2370 = vmatprep.mubr.bf16.mxu0 0
        %2371 = vmatmul.mubr.bf16.gmra.mrb[0].mxu0 %v2226
        %v2372 = vpop.f32.mrb[0].mxu0
        %v2373 = vadd.f32 0.0, %v2372
        %v2374 = vpop.f32.mrb[0].mxu0
        %v2375 = vpop.f32.mrb[0].mxu0
        %v2376 = vadd.f32 0.0, %v2375
        %v2377 = vpop.f32.mrb[0].mxu0
        %2378 = vmatprep.mubr.bf16.mxu0 0
        %2379 = vmatmul.mubr.bf16.gmra.mrb[0].mxu0 %v2229
        %v2380 = vpop.f32.mrb[0].mxu0
        %v2381 = vadd.f32 0.0, %v2380
        %v2382 = vpop.f32.mrb[0].mxu0
        %v2383 = vpop.f32.mrb[0].mxu0
        %v2384 = vadd.f32 0.0, %v2383
        %v2385 = vpop.f32.mrb[0].mxu0
        %2386 = vmatprep.mubr.bf16.mxu0 0
        %2387 = vmatmul.mubr.bf16.gmra.mrb[0].mxu0 %v2232
        %v2388 = vpop.f32.mrb[0].mxu0
        %v2389 = vadd.f32 0.0, %v2388
        %v2390 = vpop.f32.mrb[0].mxu0
        %v2391 = vpop.f32.mrb[0].mxu0
        %v2392 = vadd.f32 0.0, %v2391
        %v2393 = vpop.f32.mrb[0].mxu0
        %2394 = vdwg.mxu0
        %2395 = vst.msk [vmem:[%s232] sm:$0xff] %vm244, %v2269
        %2396 = vst.msk [vmem:[%s232 + $0x8] sm:$0xff] %vm244, %v2272
        %2397 = vst.msk [vmem:[%s232 + $0x10] sm:$0xff] %vm244, %v2277
        %2398 = vst.msk [vmem:[%s232 + $0x18] sm:$0xff] %vm244, %v2280
        %2399 = vst.msk [vmem:[%s232 + $0x20] sm:$0xff] %vm244, %v2285
        %2400 = vst.msk [vmem:[%s232 + $0x28] sm:$0xff] %vm244, %v2288
        %2401 = vst.msk [vmem:[%s232 + $0x30] sm:$0xff] %vm244, %v2293
        %2402 = vst.msk [vmem:[%s232 + $0x38] sm:$0xff] %vm244, %v2296
        %2403 = vst.msk [vmem:[%s232 + $0x40] sm:$0xff] %vm244, %v2301
        %2404 = vst.msk [vmem:[%s232 + $0x48] sm:$0xff] %vm244, %v2304
        %2405 = vst.msk [vmem:[%s232 + $0x50] sm:$0xff] %vm244, %v2309
        %2406 = vst.msk [vmem:[%s232 + $0x58] sm:$0xff] %vm244, %v2312
        %2407 = vst.msk [vmem:[%s232 + $0x60] sm:$0xff] %vm244, %v2317
        %2408 = vst.msk [vmem:[%s232 + $0x68] sm:$0xff] %vm244, %v2320
        %2409 = vst.msk [vmem:[%s232 + $0x70] sm:$0xff] %vm244, %v2325
        %2410 = vst.msk [vmem:[%s232 + $0x78] sm:$0xff] %vm244, %v2328
        %2411 = vst.msk [vmem:[%s232 + $0x80] sm:$0xff] %vm244, %v2333
        %2412 = vst.msk [vmem:[%s232 + $0x88] sm:$0xff] %vm244, %v2336
        %2413 = vst.msk [vmem:[%s232 + $0x90] sm:$0xff] %vm244, %v2341
        %2414 = vst.msk [vmem:[%s232 + $0x98] sm:$0xff] %vm244, %v2344
        %2415 = vst.msk [vmem:[%s232 + $0xa0] sm:$0xff] %vm244, %v2349
        %2416 = vst.msk [vmem:[%s232 + $0xa8] sm:$0xff] %vm244, %v2352
        %2417 = vst.msk [vmem:[%s232 + $0xb0] sm:$0xff] %vm244, %v2357
        %2418 = vst.msk [vmem:[%s232 + $0xb8] sm:$0xff] %vm244, %v2360
        %2419 = vst.msk [vmem:[%s232 + $0xc0] sm:$0xff] %vm244, %v2365
        %2420 = vst.msk [vmem:[%s232 + $0xc8] sm:$0xff] %vm244, %v2368
        %2421 = vst.msk [vmem:[%s232 + $0xd0] sm:$0xff] %vm244, %v2373
        %2422 = vst.msk [vmem:[%s232 + $0xd8] sm:$0xff] %vm244, %v2376
        %2423 = vst.msk [vmem:[%s232 + $0xe0] sm:$0xff] %vm244, %v2381
        %2424 = vst.msk [vmem:[%s232 + $0xe8] sm:$0xff] %vm244, %v2384
        %2425 = vst.msk [vmem:[%s232 + $0xf0] sm:$0xff] %vm244, %v2389
        %2426 = vst.msk [vmem:[%s232 + $0xf8] sm:$0xff] %vm244, %v2392
        %s2427 = sand.u32 %s142, 1
        %s2428 = scalar_lea.sflag [#allocation5], %s2427
        %s2429 = sand.u32 %s142, 1
        %s2430 = smul.addr %s2429, 256
        %s2431 = scalar_lea.vmem [#allocation4], %s2430
        // Predicated region
        $region41: #{tpu_custom_call.1} parent=39 // pred_check
          %p2432 = pneg %p152
        $region42: #{tpu_custom_call.1} parent=39 // pred_check_branch
          %2434 = sbr.rel (%p2432) target = $region44
        $region43: #{tpu_custom_call.1} parent=39 // pred_region
          %s2436 = ssub.s32 4096, 4096
          %2437 = vsyncadd %s2428, %s2436
          %s2438 = smul.addr %s19, 32
          %s2439 = smul.addr %s2438, 128
          %s2440 = scalar_lea.hbm %s5, %s2439
          %s2441 = sshll.u32 %s2431, 4
          %s2442 = int_to_ptr.vmem [resolvable:$true] %s2441
          %2447 = dma.vmem_to_hbm [thread:$0]  %s2442, 4096, %s2440, %s2428, 128, 128, 8
        $region44: #{tpu_custom_call.1} parent=39 // pred_fallthru
          _
      $region40: #{tpu_custom_call.1} parent=5 // pred_fallthru
        _
      %p2448 = scmp.le.s32.totalorder 2, %s14
      // Predicated region
      $region45: #{tpu_custom_call.1} parent=5 // pred_check
        %p2449 = pneg %p2448
      $region46: #{tpu_custom_call.1} parent=5 // pred_check_branch
        %2451 = sbr.rel (%p2449) target = $region48
      $region47: #{tpu_custom_call.1} parent=5 // pred_region
        %s2452 = ssub.s32 %s14, 2
        // Predicated region
        $region49: #{tpu_custom_call.1} parent=47 // pred_check
          %p2453 = pneg %p158
        $region50: #{tpu_custom_call.1} parent=47 // pred_check_branch
          %2455 = sbr.rel (%p2453) target = $region52
        $region51: #{tpu_custom_call.1} parent=47 // pred_region
          %s2456 = sand.u32 %s143, 1
          %s2457 = scalar_lea.sflag [#allocation5], %s2456
          %s2458 = sand.u32 %s143, 1
          %s2459 = smul.addr %s2458, 256
          %s2460 = scalar_lea.vmem [#allocation4], %s2459
          %2461 = dma.done %s2457, 4096
        $region52: #{tpu_custom_call.1} parent=47 // pred_fallthru
          _
      $region48: #{tpu_custom_call.1} parent=5 // pred_fallthru
        _
    $region6: #{tpu_custom_call.1} parent=1 // loop_footer
      %s18 = sadd.s32 1, %s14
    $region7: #{tpu_custom_call.1} parent=1 // loop_footer_branch
      %13 = sbr.rel target = $region3
    $region8: #{tpu_custom_call.1} parent=1 // loop_exit
      _
    %2462 = vsyncpa [#allocation5], 1
    %s2463 = scalar_lea.sflag [#allocation5], 1
    %2464 = vsyncpa %s2463, 1

</llo_original>
